<compile_context>
chip_gen: v7x
topology: tpu7x:2x2x1
jax: 0.10.0
libtpu: 0.0.40
codegen_flags: <defaults>
</compile_context>

<pallas_src>
import functools

import jax
import jax.numpy as jnp
from jax import lax
from jax.experimental import pallas as pl
from jax.experimental.pallas import tpu as pltpu


def _heads_per_group(heads, dim_head):
    """Smallest head group whose concatenated width is a multiple of 128 lanes
    (unmasked stores); else smallest group >= 128 lanes; else all heads at once."""
    divisors = [g for g in range(1, heads + 1) if heads % g == 0]
    for g in divisors:
        if (g * dim_head) % 128 == 0:
            return g
    for g in divisors:
        if g * dim_head >= 128:
            return g
    return heads


def spa_attention_kernel(x_ref, gamma_ref, beta_ref, wq_ref, wk_ref, wv_ref,
                         wo_ref, bo_ref, o_ref,
                         xn_scr, k_scr, v_scr, q_scr, o_scr,
                         *, heads, dim_head, q_tile, heads_per_group):
    qi = pl.program_id(1)
    eps = 1e-5

    # ---- per-batch-element prologue (qi == 0): LayerNorm the whole sequence once,
    # cache it, and project K/V once.  Correct ONLY because qi is the innermost,
    # sequentially iterated ("arbitrary") grid axis, so the scratch persists across
    # the query tiles of this batch element. ----
    @pl.when(qi == 0)
    def _():
        x = x_ref[0]                                          # (N, D) f32
        mean = jnp.mean(x, axis=-1, keepdims=True)            # stats stay f32
        cx = x - mean
        var = jnp.mean(cx * cx, axis=-1, keepdims=True)
        xn = (cx * lax.rsqrt(var + eps)) * gamma_ref[0] + beta_ref[0]
        xn = xn.astype(jnp.bfloat16)
        xn_scr[...] = xn
        k_scr[...] = jnp.dot(xn, wk_ref[...],
                             preferred_element_type=jnp.float32).astype(k_scr.dtype)
        v_scr[...] = jnp.dot(xn, wv_ref[...],
                             preferred_element_type=jnp.float32).astype(v_scr.dtype)

    # ---- query tile: slice cached normalized activations (no redundant LayerNorm)
    # and project Q; softmax scale already folded into W_q host-side. ----
    row0 = pl.multiple_of(qi * q_tile, q_tile)
    xq = xn_scr[pl.ds(row0, q_tile), :]                       # (TQ, D) bf16
    q_scr[...] = jnp.dot(xq, wq_ref[...],
                         preferred_element_type=jnp.float32).astype(q_scr.dtype)

    group_w = heads_per_group * dim_head
    # Static Python loop: head/group count is small at typical sizes.
    # TODO(synk): switch to lax.fori_loop(unroll=2) if heads grows large.
    for g in range(heads // heads_per_group):
        pv_blocks = []
        for hh in range(heads_per_group):
            h = g * heads_per_group + hh
            sl = slice(h * dim_head, (h + 1) * dim_head)
            # slice the scratch *refs* per head: only the needed lanes are loaded,
            # never an (N, inner)-sized value.
            q_h = q_scr[:, sl]                                # (TQ, dh) bf16
            k_h = k_scr[:, sl]                                # (N,  dh) bf16
            v_h = v_scr[:, sl]                                # (N,  dh) bf16
            # contract last axes directly -> no explicit K transpose (XLU stays free)
            dots = lax.dot_general(q_h, k_h, (((1,), (1,)), ((), ())),
                                   preferred_element_type=jnp.float32)   # (TQ, N) f32
            m = jnp.max(dots, axis=-1, keepdims=True)
            e = jnp.exp(dots - m)                             # f32 exp (portable, v5e-safe)
            denom = jnp.sum(e, axis=-1, keepdims=True)
            # deferred softmax normalization: unnormalized scores feed the MXU,
            # the reciprocal scales only the (TQ, dh) PV block.
            pv = jnp.dot(e.astype(jnp.bfloat16), v_h,
                         preferred_element_type=jnp.float32)  # (TQ, dh) f32
            pv = pv * pl.reciprocal(denom, approx=True)       # EUP reciprocal
            # dropout p = 0.0 -> identity.  TODO(synk): no stochastic dropout implemented.
            pv_blocks.append(pv.astype(o_scr.dtype))
        blk = pv_blocks[0] if heads_per_group == 1 else jnp.concatenate(pv_blocks, axis=-1)
        o_scr[:, g * group_w:(g + 1) * group_w] = blk         # group-wide store

    # ---- output projection: single (TQ, inner) @ (inner, D) matmul + bias ----
    y = jnp.dot(o_scr[...], wo_ref[...],
                preferred_element_type=jnp.float32) + bo_ref[0]
    o_ref[0] = y.astype(o_ref.dtype)


def _default_vmem_limit_bytes():
    # Leave headroom below physical VMEM (64 MiB v7x, 128 MiB v5e/v6e) for the
    # compiler's internal scratch and pipeline buffers.
    try:
        cap = pltpu.get_tpu_info().vmem_capacity_bytes
        return int(cap * 0.8)
    except Exception:
        return 48 * 1024 * 1024


def spa_attention(x, gamma, beta, w_qkv, w_out, b_out, *, heads, dim_head,
                  q_tile=256, vmem_limit_bytes=None):
    B, N, D = x.shape
    inner = heads * dim_head
    assert w_qkv.shape == (D, 3 * inner)
    assert w_out.shape == (inner, D)

    q_tile = min(q_tile, N)
    assert N % q_tile == 0, "sequence length must be divisible by the query tile"

    if vmem_limit_bytes is None:
        vmem_limit_bytes = _default_vmem_limit_bytes()

    scale = dim_head ** (-0.5)
    # Split the fused QKV weight; fold the softmax scale into W_q (zero in-kernel
    # cost); cast all MXU operands to bf16 (accumulation stays f32 in-kernel).
    w_q = (w_qkv[:, :inner] * scale).astype(jnp.bfloat16)
    w_k = w_qkv[:, inner:2 * inner].astype(jnp.bfloat16)
    w_v = w_qkv[:, 2 * inner:].astype(jnp.bfloat16)
    w_o = w_out.astype(jnp.bfloat16)

    gamma2 = gamma.reshape(1, D).astype(jnp.float32)
    beta2 = beta.reshape(1, D).astype(jnp.float32)
    b_out2 = b_out.reshape(1, D).astype(jnp.float32)

    heads_per_group = _heads_per_group(heads, dim_head)

    kernel = functools.partial(spa_attention_kernel, heads=heads,
                               dim_head=dim_head, q_tile=q_tile,
                               heads_per_group=heads_per_group)

    flops = B * (2 * N * D * 3 * inner      # QKV projection
                 + 4 * N * N * inner        # scores + attn @ V
                 + 2 * N * inner * D)       # output projection
    cost = pl.CostEstimate(
        flops=flops,
        transcendentals=B * heads * N * N,
        bytes_accessed=4 * 2 * B * N * D + 2 * (3 * D * inner + inner * D) + 4 * 3 * D)

    const = lambda b, qi: (0, 0)            # constant block index -> VMEM-resident

    def resident(shape):
        # Constant operands never change block -> single-buffer them (halves their
        # VMEM footprint; most valuable on v7x's 64 MiB VMEM).
        try:
            return pl.BlockSpec(shape, const, pipeline_mode=pl.Buffered(buffer_count=1))
        except (AttributeError, TypeError):
            return pl.BlockSpec(shape, const)

    return pl.pallas_call(
        kernel,
        out_shape=jax.ShapeDtypeStruct((B, N, D), x.dtype),
        grid_spec=pltpu.PrefetchScalarGridSpec(
            num_scalar_prefetch=0,
            grid=(B, N // q_tile),
            in_specs=[
                # x slab: indexed by b only -> resident across the qi axis.
                pl.BlockSpec((1, N, D), lambda b, qi: (b, 0, 0)),
                resident((1, D)),            # LayerNorm gamma
                resident((1, D)),            # LayerNorm beta
                resident((D, inner)),        # W_q (bf16, scale folded in)
                resident((D, inner)),        # W_k (bf16)
                resident((D, inner)),        # W_v (bf16)
                resident((inner, D)),        # W_out (bf16)
                resident((1, D)),            # b_out
            ],
            out_specs=pl.BlockSpec((1, q_tile, D), lambda b, qi: (b, qi, 0)),
            scratch_shapes=[
                pltpu.VMEM((N, D), jnp.bfloat16),           # cached LayerNorm(x)
                pltpu.VMEM((N, inner), jnp.bfloat16),       # K (full sequence)
                pltpu.VMEM((N, inner), jnp.bfloat16),       # V (full sequence)
                pltpu.VMEM((q_tile, inner), jnp.bfloat16),  # Q tile
                pltpu.VMEM((q_tile, inner), jnp.bfloat16),  # per-tile head-output slab
            ]),
        compiler_params=pltpu.CompilerParams(
            # batch axis is megacore-shardable; qi MUST stay 'arbitrary' (innermost,
            # sequential) or the xn/K/V scratch reuse would read stale data.
            dimension_semantics=("parallel", "arbitrary"),
            vmem_limit_bytes=vmem_limit_bytes),
        cost_estimate=cost,
    )(x, gamma2, beta2, w_q, w_k, w_v, w_o, b_out2)


def spa_attention_ref(x, gamma, beta, w_qkv, w_out, b_out, *, heads, dim_head):
    """Pure-JAX f32 reference mirroring the PyTorch forward (dropout = 0)."""
    eps = 1e-5
    mean = jnp.mean(x, -1, keepdims=True)
    var = jnp.mean((x - mean) ** 2, -1, keepdims=True)
    xn = (x - mean) / jnp.sqrt(var + eps) * gamma + beta
    qkv = xn @ w_qkv
    inner = heads * dim_head
    q, k, v = qkv[..., :inner], qkv[..., inner:2 * inner], qkv[..., 2 * inner:]

    def split_heads(t):
        B, N, _ = t.shape
        return t.reshape(B, N, heads, dim_head).transpose(0, 2, 1, 3)  # b h n d

    q, k, v = map(split_heads, (q, k, v))
    dots = jnp.einsum('bhnd,bhmd->bhnm', q, k) * (dim_head ** -0.5)
    attn = jax.nn.softmax(dots, axis=-1)
    out = jnp.einsum('bhnm,bhmd->bhnd', attn, v)
    B, H, N, Dh = out.shape
    out = out.transpose(0, 2, 1, 3).reshape(B, N, H * Dh)
    return out @ w_out + b_out


if __name__ == "__main__":
    # Small, module-consistent shapes: batch=2, seq=8, dim=32, heads=4, dim_head=16.
    B, N, D = 2, 8, 32
    heads, dim_head = 4, 16
    inner = heads * dim_head

    key = jax.random.PRNGKey(0)
    kx, kg, kb, kqkv, kwo, kbo = jax.random.split(key, 6)

    x = jax.random.normal(kx, (B, N, D), dtype=jnp.float32)

    # Deterministic synthetic parameters (shapes per nn.Module __init__).
    gamma = 1.0 + 0.02 * jax.random.normal(kg, (1, D), dtype=jnp.float32)      # LN weight
    beta = 0.02 * jax.random.normal(kb, (1, D), dtype=jnp.float32)             # LN bias
    w_qkv = 0.05 * jax.random.normal(kqkv, (D, 3 * inner), dtype=jnp.float32)  # to_qkv
    w_out = 0.05 * jax.random.normal(kwo, (inner, D), dtype=jnp.float32)       # to_out W
    b_out = 0.02 * jax.random.normal(kbo, (1, D), dtype=jnp.float32)           # to_out b

    y = spa_attention(x, gamma, beta, w_qkv, w_out, b_out,
                      heads=heads, dim_head=dim_head)
    y = jax.block_until_ready(y)

    y_ref = spa_attention_ref(x, gamma[0], beta[0], w_qkv, w_out, b_out[0],
                              heads=heads, dim_head=dim_head)
    assert y.shape == (B, N, D)
    # bf16 MXU operands (f32 accumulation) + approx reciprocal -> compare against the
    # f32 reference with a correspondingly relaxed tolerance.
    assert jnp.allclose(y, y_ref, atol=1e-2, rtol=1e-2), "mismatch vs pure-JAX reference"

    print("KERNEL_OK")
</pallas_src>

<mosaic_0001>
module attributes {stable_mosaic.version = 11 : i64} {
  func.func @spa_attention_kernel(%arg0: i32, %arg1: i32, %arg2: memref<1x8x32xf32, #tpu.memory_space<vmem>>, %arg3: memref<1x32xf32, #tpu.memory_space<vmem>>, %arg4: memref<1x32xf32, #tpu.memory_space<vmem>>, %arg5: memref<32x64xbf16, #tpu.memory_space<vmem>>, %arg6: memref<32x64xbf16, #tpu.memory_space<vmem>>, %arg7: memref<32x64xbf16, #tpu.memory_space<vmem>>, %arg8: memref<64x32xbf16, #tpu.memory_space<vmem>>, %arg9: memref<1x32xf32, #tpu.memory_space<vmem>>, %arg10: memref<1x8x32xf32, #tpu.memory_space<vmem>>, %arg11: memref<8x32xbf16, #tpu.memory_space<vmem>>, %arg12: memref<8x64xbf16, #tpu.memory_space<vmem>>, %arg13: memref<8x64xbf16, #tpu.memory_space<vmem>>, %arg14: memref<8x64xbf16, #tpu.memory_space<vmem>>, %arg15: memref<8x64xbf16, #tpu.memory_space<vmem>>) attributes {dimension_semantics = [#tpu.dimension_semantics<parallel>, #tpu.dimension_semantics<arbitrary>], iteration_bounds = array<i64: 2, 1>, scalar_prefetch = 0 : i64, scratch_operands = 5 : i64, tpu.core_type = #tpu.core_type<tc>, window_params = [{transform_indices = @transform_0, window_bounds = array<i64: 1, 8, 32>}, {pipeline_mode = #tpu.pipeline_mode<synchronous>, transform_indices = @transform_1, window_bounds = array<i64: 1, 32>}, {pipeline_mode = #tpu.pipeline_mode<synchronous>, transform_indices = @transform_2, window_bounds = array<i64: 1, 32>}, {pipeline_mode = #tpu.pipeline_mode<synchronous>, transform_indices = @transform_3, window_bounds = array<i64: 32, 64>}, {pipeline_mode = #tpu.pipeline_mode<synchronous>, transform_indices = @transform_4, window_bounds = array<i64: 32, 64>}, {pipeline_mode = #tpu.pipeline_mode<synchronous>, transform_indices = @transform_5, window_bounds = array<i64: 32, 64>}, {pipeline_mode = #tpu.pipeline_mode<synchronous>, transform_indices = @transform_6, window_bounds = array<i64: 64, 32>}, {pipeline_mode = #tpu.pipeline_mode<synchronous>, transform_indices = @transform_7, window_bounds = array<i64: 1, 32>}, {transform_indices = @transform_8, window_bounds = array<i64: 1, 8, 32>}]} {
    %c0_i32 = arith.constant 0 : i32
    %0 = arith.cmpi eq, %arg1, %c0_i32 : i32
    %1 = arith.extui %0 : i1 to i32
    %c0_i32_0 = arith.constant 0 : i32
    %2 = arith.cmpi ne, %1, %c0_i32_0 : i32
    scf.if %2 {
      %c0_54 = arith.constant 0 : index
      %c0_55 = arith.constant 0 : index
      %c0_56 = arith.constant 0 : index
      %92 = vector.load %arg2[%c0_54, %c0_55, %c0_56] : memref<1x8x32xf32, #tpu.memory_space<vmem>>, vector<1x8x32xf32>
      %93 = vector.shape_cast %92 : vector<1x8x32xf32> to vector<8x32xf32>
      %cst_57 = arith.constant dense<0.000000e+00> : vector<8xf32>
      %94 = vector.multi_reduction <add>, %93, %cst_57 [1] : vector<8x32xf32> to vector<8xf32>
      %95 = vector.shape_cast %94 : vector<8xf32> to vector<8x1xf32>
      %cst_58 = arith.constant 3.200000e+01 : f32
      %96 = vector.broadcast %cst_58 : f32 to vector<8x1xf32>
      %97 = arith.divf %95, %96 : vector<8x1xf32>
      %98 = vector.broadcast %97 : vector<8x1xf32> to vector<8x32xf32>
      %99 = arith.subf %93, %98 : vector<8x32xf32>
      %100 = arith.mulf %99, %99 : vector<8x32xf32>
      %cst_59 = arith.constant dense<0.000000e+00> : vector<8xf32>
      %101 = vector.multi_reduction <add>, %100, %cst_59 [1] : vector<8x32xf32> to vector<8xf32>
      %102 = vector.shape_cast %101 : vector<8xf32> to vector<8x1xf32>
      %cst_60 = arith.constant 3.200000e+01 : f32
      %103 = vector.broadcast %cst_60 : f32 to vector<8x1xf32>
      %104 = arith.divf %102, %103 : vector<8x1xf32>
      %cst_61 = arith.constant 9.99999974E-6 : f32
      %105 = vector.broadcast %cst_61 : f32 to vector<8x1xf32>
      %106 = arith.addf %104, %105 : vector<8x1xf32>
      %107 = math.rsqrt %106 : vector<8x1xf32>
      %108 = vector.broadcast %107 : vector<8x1xf32> to vector<8x32xf32>
      %109 = arith.mulf %99, %108 : vector<8x32xf32>
      %c0_62 = arith.constant 0 : index
      %c0_63 = arith.constant 0 : index
      %110 = vector.load %arg3[%c0_62, %c0_63] : memref<1x32xf32, #tpu.memory_space<vmem>>, vector<1x32xf32>
      %111 = vector.shape_cast %110 : vector<1x32xf32> to vector<32xf32>
      %112 = vector.shape_cast %111 : vector<32xf32> to vector<1x32xf32>
      %113 = vector.broadcast %112 : vector<1x32xf32> to vector<8x32xf32>
      %114 = arith.mulf %109, %113 : vector<8x32xf32>
      %c0_64 = arith.constant 0 : index
      %c0_65 = arith.constant 0 : index
      %115 = vector.load %arg4[%c0_64, %c0_65] : memref<1x32xf32, #tpu.memory_space<vmem>>, vector<1x32xf32>
      %116 = vector.shape_cast %115 : vector<1x32xf32> to vector<32xf32>
      %117 = vector.shape_cast %116 : vector<32xf32> to vector<1x32xf32>
      %118 = vector.broadcast %117 : vector<1x32xf32> to vector<8x32xf32>
      %119 = arith.addf %114, %118 : vector<8x32xf32>
      %120 = arith.truncf %119 : vector<8x32xf32> to vector<8x32xbf16>
      %c0_66 = arith.constant 0 : index
      %c0_67 = arith.constant 0 : index
      %121 = vector.load %arg11[%c0_66, %c0_67] : memref<8x32xbf16, #tpu.memory_space<vmem>>, vector<8x32xbf16>
      tpu.vector_store %arg11[%c0_66, %c0_67], %120 {strides = array<i32>} : memref<8x32xbf16, #tpu.memory_space<vmem>>, vector<8x32xbf16>,
      %c0_68 = arith.constant 0 : index
      %c0_69 = arith.constant 0 : index
      %122 = vector.load %arg6[%c0_68, %c0_69] : memref<32x64xbf16, #tpu.memory_space<vmem>>, vector<32x64xbf16>
      %cst_70 = arith.constant dense<0.000000e+00> : vector<8x64xf32>
      %123 = tpu.matmul %120, %122, %cst_70 {dimension_numbers = #tpu.dot_dimension_numbers<[1], [0], [0], [1], [0, 0, 1, 1], [], []>} : vector<8x32xbf16>, vector<32x64xbf16>, vector<8x64xf32> -> vector<8x64xf32>
      %124 = arith.truncf %123 : vector<8x64xf32> to vector<8x64xbf16>
      %c0_71 = arith.constant 0 : index
      %c0_72 = arith.constant 0 : index
      %125 = vector.load %arg12[%c0_71, %c0_72] : memref<8x64xbf16, #tpu.memory_space<vmem>>, vector<8x64xbf16>
      tpu.vector_store %arg12[%c0_71, %c0_72], %124 {strides = array<i32>} : memref<8x64xbf16, #tpu.memory_space<vmem>>, vector<8x64xbf16>,
      %c0_73 = arith.constant 0 : index
      %c0_74 = arith.constant 0 : index
      %126 = vector.load %arg7[%c0_73, %c0_74] : memref<32x64xbf16, #tpu.memory_space<vmem>>, vector<32x64xbf16>
      %cst_75 = arith.constant dense<0.000000e+00> : vector<8x64xf32>
      %127 = tpu.matmul %120, %126, %cst_75 {dimension_numbers = #tpu.dot_dimension_numbers<[1], [0], [0], [1], [0, 0, 1, 1], [], []>} : vector<8x32xbf16>, vector<32x64xbf16>, vector<8x64xf32> -> vector<8x64xf32>
      %128 = arith.truncf %127 : vector<8x64xf32> to vector<8x64xbf16>
      %c0_76 = arith.constant 0 : index
      %c0_77 = arith.constant 0 : index
      %129 = vector.load %arg13[%c0_76, %c0_77] : memref<8x64xbf16, #tpu.memory_space<vmem>>, vector<8x64xbf16>
      tpu.vector_store %arg13[%c0_76, %c0_77], %128 {strides = array<i32>} : memref<8x64xbf16, #tpu.memory_space<vmem>>, vector<8x64xbf16>,
    } else {
    }
    %c8_i32 = arith.constant 8 : i32
    %3 = arith.muli %arg1, %c8_i32 : i32
    %4 = tpu.assume_multiple %3, 8 : i32
    %5 = arith.index_cast %4 : i32 to index
    %c0 = arith.constant 0 : index
    %6 = vector.load %arg11[%5, %c0] : memref<8x32xbf16, #tpu.memory_space<vmem>>, vector<8x32xbf16>
    %c0_1 = arith.constant 0 : index
    %c0_2 = arith.constant 0 : index
    %7 = vector.load %arg5[%c0_1, %c0_2] : memref<32x64xbf16, #tpu.memory_space<vmem>>, vector<32x64xbf16>
    %cst = arith.constant dense<0.000000e+00> : vector<8x64xf32>
    %8 = tpu.matmul %6, %7, %cst {dimension_numbers = #tpu.dot_dimension_numbers<[1], [0], [0], [1], [0, 0, 1, 1], [], []>} : vector<8x32xbf16>, vector<32x64xbf16>, vector<8x64xf32> -> vector<8x64xf32>
    %9 = arith.truncf %8 : vector<8x64xf32> to vector<8x64xbf16>
    %c0_3 = arith.constant 0 : index
    %c0_4 = arith.constant 0 : index
    %10 = vector.load %arg14[%c0_3, %c0_4] : memref<8x64xbf16, #tpu.memory_space<vmem>>, vector<8x64xbf16>
    tpu.vector_store %arg14[%c0_3, %c0_4], %9 {strides = array<i32>} : memref<8x64xbf16, #tpu.memory_space<vmem>>, vector<8x64xbf16>,
    %c0_5 = arith.constant 0 : index
    %c0_6 = arith.constant 0 : index
    %11 = vector.load %arg14[%c0_5, %c0_6] : memref<8x64xbf16, #tpu.memory_space<vmem>>, vector<8x16xbf16>
    %c0_7 = arith.constant 0 : index
    %c0_8 = arith.constant 0 : index
    %12 = vector.load %arg12[%c0_7, %c0_8] : memref<8x64xbf16, #tpu.memory_space<vmem>>, vector<8x16xbf16>
    %c0_9 = arith.constant 0 : index
    %c0_10 = arith.constant 0 : index
    %13 = vector.load %arg13[%c0_9, %c0_10] : memref<8x64xbf16, #tpu.memory_space<vmem>>, vector<8x16xbf16>
    %cst_11 = arith.constant dense<0.000000e+00> : vector<8x8xf32>
    %14 = tpu.matmul %11, %12, %cst_11 {dimension_numbers = #tpu.dot_dimension_numbers<[1], [1], [0], [0], [0, 0, 1, 0], [], []>} : vector<8x16xbf16>, vector<8x16xbf16>, vector<8x8xf32> -> vector<8x8xf32>
    %cst_12 = arith.constant dense<0xFF800000> : vector<8xf32>
    %15 = vector.multi_reduction <maximumf>, %14, %cst_12 [1] : vector<8x8xf32> to vector<8xf32>
    %16 = vector.shape_cast %15 : vector<8xf32> to vector<8x1xf32>
    %17 = vector.broadcast %16 : vector<8x1xf32> to vector<8x8xf32>
    %18 = arith.subf %14, %17 : vector<8x8xf32>
    %19 = math.exp %18 : vector<8x8xf32>
    %cst_13 = arith.constant dense<0.000000e+00> : vector<8xf32>
    %20 = vector.multi_reduction <add>, %19, %cst_13 [1] : vector<8x8xf32> to vector<8xf32>
    %21 = vector.shape_cast %20 : vector<8xf32> to vector<8x1xf32>
    %22 = arith.truncf %19 : vector<8x8xf32> to vector<8x8xbf16>
    %cst_14 = arith.constant dense<0.000000e+00> : vector<8x16xf32>
    %23 = tpu.matmul %22, %13, %cst_14 {dimension_numbers = #tpu.dot_dimension_numbers<[1], [0], [0], [1], [0, 0, 1, 1], [], []>} : vector<8x8xbf16>, vector<8x16xbf16>, vector<8x16xf32> -> vector<8x16xf32>
    %24 = tpu.reciprocal %21 {approx = true} : vector<8x1xf32> -> vector<8x1xf32>
    %25 = vector.broadcast %24 : vector<8x1xf32> to vector<8x16xf32>
    %26 = arith.mulf %23, %25 : vector<8x16xf32>
    %27 = arith.truncf %26 : vector<8x16xf32> to vector<8x16xbf16>
    %c0_15 = arith.constant 0 : index
    %c16 = arith.constant 16 : index
    %28 = vector.load %arg14[%c0_15, %c16] : memref<8x64xbf16, #tpu.memory_space<vmem>>, vector<8x16xbf16>
    %c0_16 = arith.constant 0 : index
    %c16_17 = arith.constant 16 : index
    %29 = vector.load %arg12[%c0_16, %c16_17] : memref<8x64xbf16, #tpu.memory_space<vmem>>, vector<8x16xbf16>
    %c0_18 = arith.constant 0 : index
    %c16_19 = arith.constant 16 : index
    %30 = vector.load %arg13[%c0_18, %c16_19] : memref<8x64xbf16, #tpu.memory_space<vmem>>, vector<8x16xbf16>
    %cst_20 = arith.constant dense<0.000000e+00> : vector<8x8xf32>
    %31 = tpu.matmul %28, %29, %cst_20 {dimension_numbers = #tpu.dot_dimension_numbers<[1], [1], [0], [0], [0, 0, 1, 0], [], []>} : vector<8x16xbf16>, vector<8x16xbf16>, vector<8x8xf32> -> vector<8x8xf32>
    %cst_21 = arith.constant dense<0xFF800000> : vector<8xf32>
    %32 = vector.multi_reduction <maximumf>, %31, %cst_21 [1] : vector<8x8xf32> to vector<8xf32>
    %33 = vector.shape_cast %32 : vector<8xf32> to vector<8x1xf32>
    %34 = vector.broadcast %33 : vector<8x1xf32> to vector<8x8xf32>
    %35 = arith.subf %31, %34 : vector<8x8xf32>
    %36 = math.exp %35 : vector<8x8xf32>
    %cst_22 = arith.constant dense<0.000000e+00> : vector<8xf32>
    %37 = vector.multi_reduction <add>, %36, %cst_22 [1] : vector<8x8xf32> to vector<8xf32>
    %38 = vector.shape_cast %37 : vector<8xf32> to vector<8x1xf32>
    %39 = arith.truncf %36 : vector<8x8xf32> to vector<8x8xbf16>
    %cst_23 = arith.constant dense<0.000000e+00> : vector<8x16xf32>
    %40 = tpu.matmul %39, %30, %cst_23 {dimension_numbers = #tpu.dot_dimension_numbers<[1], [0], [0], [1], [0, 0, 1, 1], [], []>} : vector<8x8xbf16>, vector<8x16xbf16>, vector<8x16xf32> -> vector<8x16xf32>
    %41 = tpu.reciprocal %38 {approx = true} : vector<8x1xf32> -> vector<8x1xf32>
    %42 = vector.broadcast %41 : vector<8x1xf32> to vector<8x16xf32>
    %43 = arith.mulf %40, %42 : vector<8x16xf32>
    %44 = arith.truncf %43 : vector<8x16xf32> to vector<8x16xbf16>
    %c0_24 = arith.constant 0 : index
    %c32 = arith.constant 32 : index
    %45 = vector.load %arg14[%c0_24, %c32] : memref<8x64xbf16, #tpu.memory_space<vmem>>, vector<8x16xbf16>
    %c0_25 = arith.constant 0 : index
    %c32_26 = arith.constant 32 : index
    %46 = vector.load %arg12[%c0_25, %c32_26] : memref<8x64xbf16, #tpu.memory_space<vmem>>, vector<8x16xbf16>
    %c0_27 = arith.constant 0 : index
    %c32_28 = arith.constant 32 : index
    %47 = vector.load %arg13[%c0_27, %c32_28] : memref<8x64xbf16, #tpu.memory_space<vmem>>, vector<8x16xbf16>
    %cst_29 = arith.constant dense<0.000000e+00> : vector<8x8xf32>
    %48 = tpu.matmul %45, %46, %cst_29 {dimension_numbers = #tpu.dot_dimension_numbers<[1], [1], [0], [0], [0, 0, 1, 0], [], []>} : vector<8x16xbf16>, vector<8x16xbf16>, vector<8x8xf32> -> vector<8x8xf32>
    %cst_30 = arith.constant dense<0xFF800000> : vector<8xf32>
    %49 = vector.multi_reduction <maximumf>, %48, %cst_30 [1] : vector<8x8xf32> to vector<8xf32>
    %50 = vector.shape_cast %49 : vector<8xf32> to vector<8x1xf32>
    %51 = vector.broadcast %50 : vector<8x1xf32> to vector<8x8xf32>
    %52 = arith.subf %48, %51 : vector<8x8xf32>
    %53 = math.exp %52 : vector<8x8xf32>
    %cst_31 = arith.constant dense<0.000000e+00> : vector<8xf32>
    %54 = vector.multi_reduction <add>, %53, %cst_31 [1] : vector<8x8xf32> to vector<8xf32>
    %55 = vector.shape_cast %54 : vector<8xf32> to vector<8x1xf32>
    %56 = arith.truncf %53 : vector<8x8xf32> to vector<8x8xbf16>
    %cst_32 = arith.constant dense<0.000000e+00> : vector<8x16xf32>
    %57 = tpu.matmul %56, %47, %cst_32 {dimension_numbers = #tpu.dot_dimension_numbers<[1], [0], [0], [1], [0, 0, 1, 1], [], []>} : vector<8x8xbf16>, vector<8x16xbf16>, vector<8x16xf32> -> vector<8x16xf32>
    %58 = tpu.reciprocal %55 {approx = true} : vector<8x1xf32> -> vector<8x1xf32>
    %59 = vector.broadcast %58 : vector<8x1xf32> to vector<8x16xf32>
    %60 = arith.mulf %57, %59 : vector<8x16xf32>
    %61 = arith.truncf %60 : vector<8x16xf32> to vector<8x16xbf16>
    %c0_33 = arith.constant 0 : index
    %c48 = arith.constant 48 : index
    %62 = vector.load %arg14[%c0_33, %c48] : memref<8x64xbf16, #tpu.memory_space<vmem>>, vector<8x16xbf16>
    %c0_34 = arith.constant 0 : index
    %c48_35 = arith.constant 48 : index
    %63 = vector.load %arg12[%c0_34, %c48_35] : memref<8x64xbf16, #tpu.memory_space<vmem>>, vector<8x16xbf16>
    %c0_36 = arith.constant 0 : index
    %c48_37 = arith.constant 48 : index
    %64 = vector.load %arg13[%c0_36, %c48_37] : memref<8x64xbf16, #tpu.memory_space<vmem>>, vector<8x16xbf16>
    %cst_38 = arith.constant dense<0.000000e+00> : vector<8x8xf32>
    %65 = tpu.matmul %62, %63, %cst_38 {dimension_numbers = #tpu.dot_dimension_numbers<[1], [1], [0], [0], [0, 0, 1, 0], [], []>} : vector<8x16xbf16>, vector<8x16xbf16>, vector<8x8xf32> -> vector<8x8xf32>
    %cst_39 = arith.constant dense<0xFF800000> : vector<8xf32>
    %66 = vector.multi_reduction <maximumf>, %65, %cst_39 [1] : vector<8x8xf32> to vector<8xf32>
    %67 = vector.shape_cast %66 : vector<8xf32> to vector<8x1xf32>
    %68 = vector.broadcast %67 : vector<8x1xf32> to vector<8x8xf32>
    %69 = arith.subf %65, %68 : vector<8x8xf32>
    %70 = math.exp %69 : vector<8x8xf32>
    %cst_40 = arith.constant dense<0.000000e+00> : vector<8xf32>
    %71 = vector.multi_reduction <add>, %70, %cst_40 [1] : vector<8x8xf32> to vector<8xf32>
    %72 = vector.shape_cast %71 : vector<8xf32> to vector<8x1xf32>
    %73 = arith.truncf %70 : vector<8x8xf32> to vector<8x8xbf16>
    %cst_41 = arith.constant dense<0.000000e+00> : vector<8x16xf32>
    %74 = tpu.matmul %73, %64, %cst_41 {dimension_numbers = #tpu.dot_dimension_numbers<[1], [0], [0], [1], [0, 0, 1, 1], [], []>} : vector<8x8xbf16>, vector<8x16xbf16>, vector<8x16xf32> -> vector<8x16xf32>
    %75 = tpu.reciprocal %72 {approx = true} : vector<8x1xf32> -> vector<8x1xf32>
    %76 = vector.broadcast %75 : vector<8x1xf32> to vector<8x16xf32>
    %77 = arith.mulf %74, %76 : vector<8x16xf32>
    %78 = arith.truncf %77 : vector<8x16xf32> to vector<8x16xbf16>
    %79 = tpu.concatenate %27, %44, %61, %78 in 1 : vector<8x16xbf16>, vector<8x16xbf16>, vector<8x16xbf16>, vector<8x16xbf16> -> vector<8x64xbf16>
    %c0_42 = arith.constant 0 : index
    %c0_43 = arith.constant 0 : index
    %80 = vector.load %arg15[%c0_42, %c0_43] : memref<8x64xbf16, #tpu.memory_space<vmem>>, vector<8x64xbf16>
    tpu.vector_store %arg15[%c0_42, %c0_43], %79 {strides = array<i32>} : memref<8x64xbf16, #tpu.memory_space<vmem>>, vector<8x64xbf16>,
    %c0_44 = arith.constant 0 : index
    %c0_45 = arith.constant 0 : index
    %81 = vector.load %arg15[%c0_44, %c0_45] : memref<8x64xbf16, #tpu.memory_space<vmem>>, vector<8x64xbf16>
    %c0_46 = arith.constant 0 : index
    %c0_47 = arith.constant 0 : index
    %82 = vector.load %arg8[%c0_46, %c0_47] : memref<64x32xbf16, #tpu.memory_space<vmem>>, vector<64x32xbf16>
    %cst_48 = arith.constant dense<0.000000e+00> : vector<8x32xf32>
    %83 = tpu.matmul %81, %82, %cst_48 {dimension_numbers = #tpu.dot_dimension_numbers<[1], [0], [0], [1], [0, 0, 1, 1], [], []>} : vector<8x64xbf16>, vector<64x32xbf16>, vector<8x32xf32> -> vector<8x32xf32>
    %c0_49 = arith.constant 0 : index
    %c0_50 = arith.constant 0 : index
    %84 = vector.load %arg9[%c0_49, %c0_50] : memref<1x32xf32, #tpu.memory_space<vmem>>, vector<1x32xf32>
    %85 = vector.shape_cast %84 : vector<1x32xf32> to vector<32xf32>
    %86 = vector.shape_cast %85 : vector<32xf32> to vector<1x32xf32>
    %87 = vector.broadcast %86 : vector<1x32xf32> to vector<8x32xf32>
    %88 = arith.addf %83, %87 : vector<8x32xf32>
    %c0_51 = arith.constant 0 : index
    %c0_52 = arith.constant 0 : index
    %c0_53 = arith.constant 0 : index
    %89 = vector.load %arg10[%c0_51, %c0_52, %c0_53] : memref<1x8x32xf32, #tpu.memory_space<vmem>>, vector<1x8x32xf32>
    %90 = vector.shape_cast %89 : vector<1x8x32xf32> to vector<8x32xf32>
    %91 = vector.shape_cast %88 : vector<8x32xf32> to vector<1x8x32xf32>
    tpu.vector_store %arg10[%c0_51, %c0_52, %c0_53], %91 {strides = array<i32>} : memref<1x8x32xf32, #tpu.memory_space<vmem>>, vector<1x8x32xf32>,
    return
  }
  func.func @transform_0(%arg0: i32, %arg1: i32) -> (i32, i32, i32) {
    %c0_i32 = arith.constant 0 : i32
    %c0_i32_0 = arith.constant 0 : i32
    %c0_i32_1 = arith.constant 0 : i32
    return %arg0, %c0_i32, %c0_i32_0 : i32, i32, i32
  }
  func.func @transform_1(%arg0: i32, %arg1: i32) -> (i32, i32) {
    %c0_i32 = arith.constant 0 : i32
    %c0_i32_0 = arith.constant 0 : i32
    %c0_i32_1 = arith.constant 0 : i32
    return %c0_i32, %c0_i32_0 : i32, i32
  }
  func.func @transform_2(%arg0: i32, %arg1: i32) -> (i32, i32) {
    %c0_i32 = arith.constant 0 : i32
    %c0_i32_0 = arith.constant 0 : i32
    %c0_i32_1 = arith.constant 0 : i32
    return %c0_i32, %c0_i32_0 : i32, i32
  }
  func.func @transform_3(%arg0: i32, %arg1: i32) -> (i32, i32) {
    %c0_i32 = arith.constant 0 : i32
    %c0_i32_0 = arith.constant 0 : i32
    %c0_i32_1 = arith.constant 0 : i32
    return %c0_i32, %c0_i32_0 : i32, i32
  }
  func.func @transform_4(%arg0: i32, %arg1: i32) -> (i32, i32) {
    %c0_i32 = arith.constant 0 : i32
    %c0_i32_0 = arith.constant 0 : i32
    %c0_i32_1 = arith.constant 0 : i32
    return %c0_i32, %c0_i32_0 : i32, i32
  }
  func.func @transform_5(%arg0: i32, %arg1: i32) -> (i32, i32) {
    %c0_i32 = arith.constant 0 : i32
    %c0_i32_0 = arith.constant 0 : i32
    %c0_i32_1 = arith.constant 0 : i32
    return %c0_i32, %c0_i32_0 : i32, i32
  }
  func.func @transform_6(%arg0: i32, %arg1: i32) -> (i32, i32) {
    %c0_i32 = arith.constant 0 : i32
    %c0_i32_0 = arith.constant 0 : i32
    %c0_i32_1 = arith.constant 0 : i32
    return %c0_i32, %c0_i32_0 : i32, i32
  }
  func.func @transform_7(%arg0: i32, %arg1: i32) -> (i32, i32) {
    %c0_i32 = arith.constant 0 : i32
    %c0_i32_0 = arith.constant 0 : i32
    %c0_i32_1 = arith.constant 0 : i32
    return %c0_i32, %c0_i32_0 : i32, i32
  }
  func.func @transform_8(%arg0: i32, %arg1: i32) -> (i32, i32, i32) {
    %c0_i32 = arith.constant 0 : i32
    %c0_i32_0 = arith.constant 0 : i32
    return %arg0, %arg1, %c0_i32 : i32, i32, i32
  }
}

</mosaic_0001>

<llo_original>
// kernel: tpu_custom_call.1
$region0: #{tpu_custom_call.1}
  #allocation0 [shape = 'u32[]', space=smem, size = 0x4, offset = 0x4, fixed_abs, tag = 'smem constant byte address 0x4 - core index']
  #allocation1 [shape = 'u32[144,128]{1,0:T(1,128)}', space=vmem, size = 0x12000, scoped, tag = 'internal scratch']
  #allocation2 [shape = 'bf16[8,32]{1,0:T(8,128)(2,1)}', space=vmem, size = 0x800, scoped, tag = 'scratch operand']
  #allocation3 [shape = 'bf16[8,64]{1,0:T(8,128)(2,1)}', space=vmem, size = 0x800, scoped, tag = 'scratch operand']
  #allocation4 [shape = 'bf16[8,64]{1,0:T(8,128)(2,1)}', space=vmem, size = 0x800, scoped, tag = 'scratch operand']
  #allocation5 [shape = 'bf16[8,64]{1,0:T(8,128)(2,1)}', space=vmem, size = 0x800, scoped, tag = 'scratch operand']
  #allocation6 [shape = 'bf16[8,64]{1,0:T(8,128)(2,1)}', space=vmem, size = 0x800, scoped, tag = 'scratch operand']
  %s0 = inlined_call_operand.vmem [shape: f32[2,8,32], index: 0, kind: input, shape index: {}]
  %s1 = inlined_call_operand.vmem [shape: f32[1,32], index: 1, kind: input, shape index: {}]
  %s2 = inlined_call_operand.vmem [shape: f32[1,32], index: 2, kind: input, shape index: {}]
  %s3 = inlined_call_operand.vmem [shape: bf16[32,64], index: 3, kind: input, shape index: {}]
  %s4 = inlined_call_operand.vmem [shape: bf16[32,64], index: 4, kind: input, shape index: {}]
  %s5 = inlined_call_operand.hbm [shape: bf16[32,64], index: 5, kind: input, shape index: {}]
  %s6 = inlined_call_operand.vmem [shape: bf16[64,32], index: 6, kind: input, shape index: {}]
  %s7 = inlined_call_operand.vmem [shape: f32[1,32], index: 7, kind: input, shape index: {}]
  %s8 = inlined_call_operand.hbm [shape: f32[2,8,32], index: 8, kind: output, shape index: {}]
  %s9 = sld [smem:[#allocation0]]
  $region73: #{tpu_custom_call.1} parent=0
    _
  %s11 = ssub.s32 1, %s9
  %s12 = scalar_select 0, %s11, %s9
  $region1: #{tpu_custom_call.1} parent=0
    #allocation7 [shape = 'u8[8192]{0}', space=vmem, size = 0x2000, scoped, tag = 'input window, operand 5, single buffered']
    #allocation8 [shape = 's32[2]{0}', space=sflag, size = 0x8, scoped, tag = 'scoped memory for tpu_custom_call.1']
    #allocation9 [shape = 's32[2]{0}', space=sflag, size = 0x8, scoped, tag = 'scoped memory for tpu_custom_call.1']
    #allocation10 [shape = 'u8[8192]{0}', space=vmem, size = 0x2000, scoped, tag = 'output window, operand 0']
    %13 = vsyncpa [#allocation8], 0
    %14 = vsyncpa [#allocation9], 0
    %s15 = scalar_lea.sflag [#allocation9], 1
    %16 = vsyncpa %s15, 0
    loop: start=0, step=1, limit=4
    $region2: #{tpu_custom_call.1} parent=1 // loop_pre_header
      _
    $region3: #{tpu_custom_call.1} parent=1 // loop_header
      %s18 = sphi 0, %s22
      %p19 = scmp.ge.s32.totalorder %s18, 4
      %s25 = sphi 0, %s37
      %s26 = sphi 0, %s33
      %s27 = sphi 0, %s25
      %s28 = sphi 0, %s26
      %s29 = sphi 0, %s27
      %s30 = sphi 0, %s28
      %s40 = sphi 0, %s42
      %s43 = sphi 0, %s40
      %s44 = sphi 0, %s43
      %s60 = sphi 0, %s44
      %s64 = sphi 0, %s64
      %s66 = sphi 0, %s64
      %s67 = sphi 0, %s66
      %s81 = sphi 0, %s67
      %s85 = sphi 0, %s85
      %s87 = sphi 0, %s85
      %s88 = sphi 0, %s87
      %s102 = sphi 0, %s88
      %s106 = sphi 0, %s106
      %s108 = sphi 0, %s106
      %s109 = sphi 0, %s108
      %s123 = sphi 0, %s109
      %s127 = sphi 0, %s127
      %s129 = sphi 0, %s127
      %s130 = sphi 0, %s129
      %s144 = sphi 0, %s130
      %s148 = sphi 0, %s148
      %s150 = sphi 0, %s148
      %s151 = sphi 0, %s150
      %s165 = sphi 0, %s151
      %s169 = sphi 0, %s169
      %s171 = sphi 0, %s169
      %s172 = sphi 0, %s171
      %s186 = sphi 0, %s172
      %s190 = sphi 0, %s190
      %s192 = sphi 0, %s190
      %s193 = sphi 0, %s192
      %s207 = sphi 0, %s193
      %s215 = sphi 0, %s217
      %s218 = sphi 0, %s215
      %s219 = sphi 0, %s218
      %s235 = sphi 0, %s219
    $region4: #{tpu_custom_call.1} parent=1 // loop_header_branch
      %21 = sbr.rel (%p19) target = $region8
    $region5: #{tpu_custom_call.1} parent=1 // loop_body
      %s23 = ssub.s32 %s18, 1
      %s24 = ssub.s32 %s18, 2
      %s31 = sadd.s32 1, %s26
      %p32 = scmp.ge.s32.totalorder %s31, 1
      %s33 = scalar_select %p32, 0, %s31
      %s34 = sadd.s32 1, %s25
      %s35 = scalar_select %p32, %s34, %s25
      %p36 = scmp.ge.s32.totalorder %s35, 2
      %s37 = scalar_select %p36, 0, %s35
      %s38 = ssub.s32 %s25, %s37
      %p39 = scmp.eq.s32.totalorder %s38, 0
      %s41 = sadd.s32 %s40, 1
      %s42 = scalar_select %p39, %s40, %s41
      %p45 = pneg %p39
      %p46 = scmp.eq.s32.totalorder %s18, 1
      %p47 = por %p45, %p46
      %p48 = scmp.ne.s32.totalorder %s40, %s43
      %p49 = scmp.eq.s32.totalorder %s18, 0
      %p50 = por %p48, %p49
      %p51 = scmp.ne.s32.totalorder %s40, %s43
      %p52 = scmp.eq.s32.totalorder %s23, 1
      %p53 = por %p51, %p52
      %p54 = scmp.ne.s32.totalorder %s43, %s44
      %p55 = scmp.eq.s32.totalorder %s23, 0
      %p56 = por %p54, %p55
      %p57 = scmp.ne.s32.totalorder %s43, %s44
      %p58 = scmp.eq.s32.totalorder %s24, 1
      %p59 = por %p57, %p58
      %p61 = scmp.ne.s32.totalorder %s44, %s60
      %p62 = scmp.eq.s32.totalorder %s24, 0
      %p63 = por %p61, %p62
      %s65 = sadd.s32 %s64, 1
      %p68 = scmp.eq.s32.totalorder %s18, 1
      %p69 = scmp.ne.s32.totalorder %s64, %s66
      %p70 = scmp.eq.s32.totalorder %s18, 0
      %p71 = por %p69, %p70
      %p72 = scmp.ne.s32.totalorder %s64, %s66
      %p73 = scmp.eq.s32.totalorder %s23, 1
      %p74 = por %p72, %p73
      %p75 = scmp.ne.s32.totalorder %s66, %s67
      %p76 = scmp.eq.s32.totalorder %s23, 0
      %p77 = por %p75, %p76
      %p78 = scmp.ne.s32.totalorder %s66, %s67
      %p79 = scmp.eq.s32.totalorder %s24, 1
      %p80 = por %p78, %p79
      %p82 = scmp.ne.s32.totalorder %s67, %s81
      %p83 = scmp.eq.s32.totalorder %s24, 0
      %p84 = por %p82, %p83
      %s86 = sadd.s32 %s85, 1
      %p89 = scmp.eq.s32.totalorder %s18, 1
      %p90 = scmp.ne.s32.totalorder %s85, %s87
      %p91 = scmp.eq.s32.totalorder %s18, 0
      %p92 = por %p90, %p91
      %p93 = scmp.ne.s32.totalorder %s85, %s87
      %p94 = scmp.eq.s32.totalorder %s23, 1
      %p95 = por %p93, %p94
      %p96 = scmp.ne.s32.totalorder %s87, %s88
      %p97 = scmp.eq.s32.totalorder %s23, 0
      %p98 = por %p96, %p97
      %p99 = scmp.ne.s32.totalorder %s87, %s88
      %p100 = scmp.eq.s32.totalorder %s24, 1
      %p101 = por %p99, %p100
      %p103 = scmp.ne.s32.totalorder %s88, %s102
      %p104 = scmp.eq.s32.totalorder %s24, 0
      %p105 = por %p103, %p104
      %s107 = sadd.s32 %s106, 1
      %p110 = scmp.eq.s32.totalorder %s18, 1
      %p111 = scmp.ne.s32.totalorder %s106, %s108
      %p112 = scmp.eq.s32.totalorder %s18, 0
      %p113 = por %p111, %p112
      %p114 = scmp.ne.s32.totalorder %s106, %s108
      %p115 = scmp.eq.s32.totalorder %s23, 1
      %p116 = por %p114, %p115
      %p117 = scmp.ne.s32.totalorder %s108, %s109
      %p118 = scmp.eq.s32.totalorder %s23, 0
      %p119 = por %p117, %p118
      %p120 = scmp.ne.s32.totalorder %s108, %s109
      %p121 = scmp.eq.s32.totalorder %s24, 1
      %p122 = por %p120, %p121
      %p124 = scmp.ne.s32.totalorder %s109, %s123
      %p125 = scmp.eq.s32.totalorder %s24, 0
      %p126 = por %p124, %p125
      %s128 = sadd.s32 %s127, 1
      %p131 = scmp.eq.s32.totalorder %s18, 1
      %p132 = scmp.ne.s32.totalorder %s127, %s129
      %p133 = scmp.eq.s32.totalorder %s18, 0
      %p134 = por %p132, %p133
      %p135 = scmp.ne.s32.totalorder %s127, %s129
      %p136 = scmp.eq.s32.totalorder %s23, 1
      %p137 = por %p135, %p136
      %p138 = scmp.ne.s32.totalorder %s129, %s130
      %p139 = scmp.eq.s32.totalorder %s23, 0
      %p140 = por %p138, %p139
      %p141 = scmp.ne.s32.totalorder %s129, %s130
      %p142 = scmp.eq.s32.totalorder %s24, 1
      %p143 = por %p141, %p142
      %p145 = scmp.ne.s32.totalorder %s130, %s144
      %p146 = scmp.eq.s32.totalorder %s24, 0
      %p147 = por %p145, %p146
      %s149 = sadd.s32 %s148, 1
      %p152 = scmp.eq.s32.totalorder %s18, 1
      %p153 = scmp.ne.s32.totalorder %s148, %s150
      %p154 = scmp.eq.s32.totalorder %s18, 0
      %p155 = por %p153, %p154
      %p156 = scmp.ne.s32.totalorder %s148, %s150
      %p157 = scmp.eq.s32.totalorder %s23, 1
      %p158 = por %p156, %p157
      %p159 = scmp.ne.s32.totalorder %s150, %s151
      %p160 = scmp.eq.s32.totalorder %s23, 0
      %p161 = por %p159, %p160
      %p162 = scmp.ne.s32.totalorder %s150, %s151
      %p163 = scmp.eq.s32.totalorder %s24, 1
      %p164 = por %p162, %p163
      %p166 = scmp.ne.s32.totalorder %s151, %s165
      %p167 = scmp.eq.s32.totalorder %s24, 0
      %p168 = por %p166, %p167
      %s170 = sadd.s32 %s169, 1
      %p173 = scmp.eq.s32.totalorder %s18, 1
      %p174 = scmp.ne.s32.totalorder %s169, %s171
      %p175 = scmp.eq.s32.totalorder %s18, 0
      %p176 = por %p174, %p175
      %p177 = scmp.ne.s32.totalorder %s169, %s171
      %p178 = scmp.eq.s32.totalorder %s23, 1
      %p179 = por %p177, %p178
      %p180 = scmp.ne.s32.totalorder %s171, %s172
      %p181 = scmp.eq.s32.totalorder %s23, 0
      %p182 = por %p180, %p181
      %p183 = scmp.ne.s32.totalorder %s171, %s172
      %p184 = scmp.eq.s32.totalorder %s24, 1
      %p185 = por %p183, %p184
      %p187 = scmp.ne.s32.totalorder %s172, %s186
      %p188 = scmp.eq.s32.totalorder %s24, 0
      %p189 = por %p187, %p188
      %s191 = sadd.s32 %s190, 1
      %p194 = scmp.eq.s32.totalorder %s18, 1
      %p195 = scmp.ne.s32.totalorder %s190, %s192
      %p196 = scmp.eq.s32.totalorder %s18, 0
      %p197 = por %p195, %p196
      %p198 = scmp.ne.s32.totalorder %s190, %s192
      %p199 = scmp.eq.s32.totalorder %s23, 1
      %p200 = por %p198, %p199
      %p201 = scmp.ne.s32.totalorder %s192, %s193
      %p202 = scmp.eq.s32.totalorder %s23, 0
      %p203 = por %p201, %p202
      %p204 = scmp.ne.s32.totalorder %s192, %s193
      %p205 = scmp.eq.s32.totalorder %s24, 1
      %p206 = por %p204, %p205
      %p208 = scmp.ne.s32.totalorder %s193, %s207
      %p209 = scmp.eq.s32.totalorder %s24, 0
      %p210 = por %p208, %p209
      %s211 = ssub.s32 %s25, %s37
      %s212 = ssub.s32 %s26, %s33
      %s213 = sor.u32 %s211, %s212
      %p214 = scmp.eq.s32.totalorder %s213, 0
      %s216 = sadd.s32 %s215, 1
      %s217 = scalar_select %p214, %s215, %s216
      %p220 = pneg %p214
      %p221 = scmp.eq.s32.totalorder %s18, 1
      %p222 = por %p220, %p221
      %p223 = scmp.ne.s32.totalorder %s215, %s218
      %p224 = scmp.eq.s32.totalorder %s18, 0
      %p225 = por %p223, %p224
      %p226 = scmp.ne.s32.totalorder %s215, %s218
      %p227 = scmp.eq.s32.totalorder %s23, 1
      %p228 = por %p226, %p227
      %p229 = scmp.ne.s32.totalorder %s218, %s219
      %p230 = scmp.eq.s32.totalorder %s23, 0
      %p231 = por %p229, %p230
      %p232 = scmp.ne.s32.totalorder %s218, %s219
      %p233 = scmp.eq.s32.totalorder %s24, 1
      %p234 = por %p232, %p233
      %p236 = scmp.ne.s32.totalorder %s219, %s235
      %p237 = scmp.eq.s32.totalorder %s24, 0
      %p238 = por %p236, %p237
      %p239 = scmp.le.s32.totalorder 1, %s18
      %p240 = scmp.lt.s32.totalorder %s18, 3
      %p241 = pnand %p239, %p240
      %p242 = pneg %p241
      // Predicated region
      $region9: #{tpu_custom_call.1} parent=5 // pred_check
        _
      $region10: #{tpu_custom_call.1} parent=5 // pred_check_branch
        %244 = sbr.rel (%p241) target = $region12
      $region11: #{tpu_custom_call.1} parent=5 // pred_region
        %s245 = ssub.s32 %s18, 1
        // Predicated region
        $region13: #{tpu_custom_call.1} parent=11 // pred_check
          %p246 = pneg %p77
        $region14: #{tpu_custom_call.1} parent=11 // pred_check_branch
          %248 = sbr.rel (%p246) target = $region16
        $region15: #{tpu_custom_call.1} parent=11 // pred_region
          _
        $region16: #{tpu_custom_call.1} parent=11 // pred_fallthru
          _
        // Predicated region
        $region17: #{tpu_custom_call.1} parent=11 // pred_check
          %p249 = pneg %p98
        $region18: #{tpu_custom_call.1} parent=11 // pred_check_branch
          %251 = sbr.rel (%p249) target = $region20
        $region19: #{tpu_custom_call.1} parent=11 // pred_region
          _
        $region20: #{tpu_custom_call.1} parent=11 // pred_fallthru
          _
        // Predicated region
        $region21: #{tpu_custom_call.1} parent=11 // pred_check
          %p252 = pneg %p119
        $region22: #{tpu_custom_call.1} parent=11 // pred_check_branch
          %254 = sbr.rel (%p252) target = $region24
        $region23: #{tpu_custom_call.1} parent=11 // pred_region
          _
        $region24: #{tpu_custom_call.1} parent=11 // pred_fallthru
          _
        // Predicated region
        $region25: #{tpu_custom_call.1} parent=11 // pred_check
          %p255 = pneg %p140
        $region26: #{tpu_custom_call.1} parent=11 // pred_check_branch
          %257 = sbr.rel (%p255) target = $region28
        $region27: #{tpu_custom_call.1} parent=11 // pred_region
          _
        $region28: #{tpu_custom_call.1} parent=11 // pred_fallthru
          _
        // Predicated region
        $region29: #{tpu_custom_call.1} parent=11 // pred_check
          %p258 = pneg %p161
        $region30: #{tpu_custom_call.1} parent=11 // pred_check_branch
          %260 = sbr.rel (%p258) target = $region32
        $region31: #{tpu_custom_call.1} parent=11 // pred_region
          %s262 = ssub.s32 256, 256
          %263 = vsyncadd [#allocation8], %s262
          %s264 = sshll.u32 [#allocation7], 4
          %s265 = int_to_ptr.vmem [resolvable:$true] %s264
          %270 = dma.hbm_to_vmem [thread:$0]  %s5, 256, %s265, [#allocation8], 64, 64, 4
        $region32: #{tpu_custom_call.1} parent=11 // pred_fallthru
          _
        // Predicated region
        $region33: #{tpu_custom_call.1} parent=11 // pred_check
          %p271 = pneg %p182
        $region34: #{tpu_custom_call.1} parent=11 // pred_check_branch
          %273 = sbr.rel (%p271) target = $region36
        $region35: #{tpu_custom_call.1} parent=11 // pred_region
          _
        $region36: #{tpu_custom_call.1} parent=11 // pred_fallthru
          _
        // Predicated region
        $region37: #{tpu_custom_call.1} parent=11 // pred_check
          %p274 = pneg %p203
        $region38: #{tpu_custom_call.1} parent=11 // pred_check_branch
          %276 = sbr.rel (%p274) target = $region40
        $region39: #{tpu_custom_call.1} parent=11 // pred_region
          _
        $region40: #{tpu_custom_call.1} parent=11 // pred_fallthru
          _
      $region12: #{tpu_custom_call.1} parent=5 // pred_fallthru
        _
      %p277 = scmp.lt.s32.totalorder %s18, 2
      // Predicated region
      $region41: #{tpu_custom_call.1} parent=5 // pred_check
        %p278 = pneg %p277
      $region42: #{tpu_custom_call.1} parent=5 // pred_check_branch
        %280 = sbr.rel (%p278) target = $region44
      $region43: #{tpu_custom_call.1} parent=5 // pred_region
        // Predicated region
        $region45: #{tpu_custom_call.1} parent=43 // pred_check
          %p281 = pneg %p50
        $region46: #{tpu_custom_call.1} parent=43 // pred_check_branch
          %283 = sbr.rel (%p281) target = $region48
        $region47: #{tpu_custom_call.1} parent=43 // pred_region
          %p284 = scmp.lt.s32.totalorder %s25, 1
          %s285 = scalar_select %p284, %s25, 1
          %s286 = smul.addr %s285, 8
          %s287 = scalar_lea.vmem %s0, %s286
        $region48: #{tpu_custom_call.1} parent=43 // pred_fallthru
          _
      $region44: #{tpu_custom_call.1} parent=5 // pred_fallthru
        _
      %p288 = scmp.le.s32.totalorder 1, %s18
      %p289 = scmp.lt.s32.totalorder %s18, 3
      %p290 = pnand %p288, %p289
      %p291 = pneg %p290
      // Predicated region
      $region49: #{tpu_custom_call.1} parent=5 // pred_check
        _
      $region50: #{tpu_custom_call.1} parent=5 // pred_check_branch
        %293 = sbr.rel (%p290) target = $region52
      $region51: #{tpu_custom_call.1} parent=5 // pred_region
        %s294 = ssub.s32 %s18, 1
        // Predicated region
        $region53: #{tpu_custom_call.1} parent=51 // pred_check
          %p295 = pneg %p161
        $region54: #{tpu_custom_call.1} parent=51 // pred_check_branch
          %297 = sbr.rel (%p295) target = $region56
        $region55: #{tpu_custom_call.1} parent=51 // pred_region
          %298 = dma.done [#allocation8], 256
        $region56: #{tpu_custom_call.1} parent=51 // pred_fallthru
          _
        %p299 = scmp.lt.s32.totalorder %s27, 1
        %s300 = scalar_select %p299, %s27, 1
        %s301 = smul.addr %s300, 8
        %s302 = scalar_lea.vmem %s0, %s301
        %p303 = pneg %p56
        %p304 = pneg %p53
        %p305 = pneg %p77
        %p306 = pneg %p74
        %p307 = pneg %p98
        %p308 = pneg %p95
        %p309 = pneg %p119
        %p310 = pneg %p116
        %p311 = pneg %p140
        %p312 = pneg %p137
        %p313 = pneg %p161
        %p314 = pneg %p158
        %p315 = pneg %p182
        %p316 = pneg %p179
        %p317 = pneg %p203
        %p318 = pneg %p200
        %p319 = pneg %p231
        %p320 = pneg %p228
        %s321 = sand.u32 %s218, 1
        %s322 = scalar_lea.sflag [#allocation9], %s321
        %s323 = sand.u32 %s218, 1
        %s324 = smul.addr %s323, 8
        %s325 = scalar_lea.vmem [#allocation10], %s324
        %p326 = scmp.lt.s32.totalorder %s27, 1
        %s327 = scalar_select %p326, %s27, 1
        %s328 = smul.addr %s327, 8
        %s329 = scalar_lea.vmem %s0, %s328
        %p331 = scmp.eq.s32.totalorder %s28, 0
        // Predicated region
        $region57: #{tpu_custom_call.1} parent=51 // pred_check
          %p332 = pneg %p331
        $region58: #{tpu_custom_call.1} parent=51 // pred_check_branch
          %334 = sbr.rel (%p332) target = $region60
        $region59: #{tpu_custom_call.1} parent=51 // pred_region
          %v335 = vld [vmem:[%s329] sm:$0xff]
          %vm336 = vcmask 261120
          %v337 = vsel %vm336, %v335, 0.0
          %338 = vadd.xlane.f32.xlu0 %v337
          %v339 = vpop.xlane.xlu0 %338
          %v340 = vrcp.pop 32.0
          %v341 = vmul.f32 %v339, %v340
          %v342 = vsub.f32 %v335, %v341
          %v343 = vmul.f32 %v342, %v342
          %v344 = vsel %vm336, %v343, 0.0
          %345 = vadd.xlane.f32.xlu0 %v344
          %v346 = vpop.xlane.xlu0 %345
          %v347 = vmul.f32 %v346, %v340
          %v348 = vadd.f32 %v347, 1e-05
          %v349 = vrsqrt.pop %v348
          %v350 = vmul.f32 %v342, %v349
          %v351 = vld [vmem:[%s1] sm:$0x1]
          %v353 = vlaneseq
          %v354 = vshrl.u32 %v353, 7
          %v355 = vsub.s32 0, %v354
          %v356 = vrot.slane %v351, %v355
          %v358 = vmul.f32 %v350, %v356
          %v359 = vld [vmem:[%s2] sm:$0x1]
          %v361 = vlaneseq
          %v362 = vshrl.u32 %v361, 7
          %v363 = vsub.s32 0, %v362
          %v364 = vrot.slane %v359, %v363
          %v366 = vadd.f32 %v358, %v364
          %v367 = vpack.c.bf16 %v366, %v366
          %vm368 = vcmask 257024
          %369 = vst.msk [vmem:[#allocation2] sm:$0xf] %vm368, %v367
          %v370 = vld [vmem:[%s4] sm:$0xf]
          %v371 = vld [vmem:[%s4 + $0x4] sm:$0xf]
          %v372 = vld [vmem:[%s4 + $0x8] sm:$0xf]
          %v373 = vld [vmem:[%s4 + $0xc] sm:$0xf]
          %v378 = vunpack.c.l.b16 %v370
          %v379 = vunpack.c.l.b16 %v371
          %v380 = vunpack.c.l.b16 %v372
          %v381 = vunpack.c.l.b16 %v373
          %v382 = vpack.c.b16 %v379, %v378
          %v383 = vpack.c.b16 %v381, %v380
          %v387 = vsel %vm336, %v367, 0
          %389 = vmatprep.subr.bf16.mxu0 0
          %390 = vmatpush1.bf16.msra.mxu0 %v382
          %391 = vmatprep.subr.bf16.mxu0 0
          %392 = vmatpush1.bf16.msra.mxu0 %v383
          %393 = vmatprep.subr.bf16.mxu0 0
          %394 = vmatpush1.bf16.msra.mxu0 0
          %395 = vmatprep.subr.bf16.mxu0 0
          %396 = vmatpush1.bf16.msra.mxu0 0
          %397 = vmatprep.subr.bf16.mxu0 0
          %398 = vmatpush1.bf16.msra.mxu0 0
          %399 = vmatprep.subr.bf16.mxu0 0
          %400 = vmatpush1.bf16.msra.mxu0 0
          %401 = vmatprep.subr.bf16.mxu0 0
          %402 = vmatpush1.bf16.msra.mxu0 0
          %403 = vmatprep.subr.bf16.mxu0 0
          %404 = vmatpush1.bf16.msra.mxu0 0
          %405 = vmatprep.subr.bf16.mxu0 0
          %406 = vmatpush1.bf16.msra.mxu0 0
          %407 = vmatprep.subr.bf16.mxu0 0
          %408 = vmatpush1.bf16.msra.mxu0 0
          %409 = vmatprep.subr.bf16.mxu0 0
          %410 = vmatpush1.bf16.msra.mxu0 0
          %411 = vmatprep.subr.bf16.mxu0 0
          %412 = vmatpush1.bf16.msra.mxu0 0
          %413 = vmatprep.subr.bf16.mxu0 0
          %414 = vmatpush1.bf16.msra.mxu0 0
          %415 = vmatprep.subr.bf16.mxu0 0
          %416 = vmatpush1.bf16.msra.mxu0 0
          %417 = vmatprep.subr.bf16.mxu0 0
          %418 = vmatpush1.bf16.msra.mxu0 0
          %419 = vmatprep.subr.bf16.mxu0 0
          %420 = vmatpush1.bf16.msra.mxu0 0
          %421 = vmatprep.mubr.bf16.mxu0 0
          %422 = vmatmul.mubr.bf16.gmra.mrb[0].mxu0 %v387
          %v423 = vpop.f32.mrb[0].mxu0
          %v424 = vadd.f32 0.0, %v423
          %v425 = vpop.f32.mrb[0].mxu0
          %v426 = vpop.f32.mrb[0].mxu0
          %v427 = vpop.f32.mrb[0].mxu0
          %428 = vdwg.mxu0
          %v429 = vpack.c.bf16 %v424, %v424
          %vm430 = vcmask 519168
          %431 = vst.msk [vmem:[#allocation3] sm:$0xf] %vm430, %v429
          %v432 = vld [vmem:[#allocation7] sm:$0xf]
          %v433 = vld [vmem:[#allocation7 + $0x4] sm:$0xf]
          %v434 = vld [vmem:[#allocation7 + $0x8] sm:$0xf]
          %v435 = vld [vmem:[#allocation7 + $0xc] sm:$0xf]
          %v440 = vunpack.c.l.b16 %v432
          %v441 = vunpack.c.l.b16 %v433
          %v442 = vunpack.c.l.b16 %v434
          %v443 = vunpack.c.l.b16 %v435
          %v444 = vpack.c.b16 %v441, %v440
          %v445 = vpack.c.b16 %v443, %v442
          %448 = vmatprep.subr.bf16.mxu0 0
          %449 = vmatpush1.bf16.msra.mxu0 %v444
          %450 = vmatprep.subr.bf16.mxu0 0
          %451 = vmatpush1.bf16.msra.mxu0 %v445
          %452 = vmatprep.subr.bf16.mxu0 0
          %453 = vmatpush1.bf16.msra.mxu0 0
          %454 = vmatprep.subr.bf16.mxu0 0
          %455 = vmatpush1.bf16.msra.mxu0 0
          %456 = vmatprep.subr.bf16.mxu0 0
          %457 = vmatpush1.bf16.msra.mxu0 0
          %458 = vmatprep.subr.bf16.mxu0 0
          %459 = vmatpush1.bf16.msra.mxu0 0
          %460 = vmatprep.subr.bf16.mxu0 0
          %461 = vmatpush1.bf16.msra.mxu0 0
          %462 = vmatprep.subr.bf16.mxu0 0
          %463 = vmatpush1.bf16.msra.mxu0 0
          %464 = vmatprep.subr.bf16.mxu0 0
          %465 = vmatpush1.bf16.msra.mxu0 0
          %466 = vmatprep.subr.bf16.mxu0 0
          %467 = vmatpush1.bf16.msra.mxu0 0
          %468 = vmatprep.subr.bf16.mxu0 0
          %469 = vmatpush1.bf16.msra.mxu0 0
          %470 = vmatprep.subr.bf16.mxu0 0
          %471 = vmatpush1.bf16.msra.mxu0 0
          %472 = vmatprep.subr.bf16.mxu0 0
          %473 = vmatpush1.bf16.msra.mxu0 0
          %474 = vmatprep.subr.bf16.mxu0 0
          %475 = vmatpush1.bf16.msra.mxu0 0
          %476 = vmatprep.subr.bf16.mxu0 0
          %477 = vmatpush1.bf16.msra.mxu0 0
          %478 = vmatprep.subr.bf16.mxu0 0
          %479 = vmatpush1.bf16.msra.mxu0 0
          %480 = vmatprep.mubr.bf16.mxu0 0
          %481 = vmatmul.mubr.bf16.gmra.mrb[0].mxu0 %v387
          %v482 = vpop.f32.mrb[0].mxu0
          %v483 = vadd.f32 0.0, %v482
          %v484 = vpop.f32.mrb[0].mxu0
          %v485 = vpop.f32.mrb[0].mxu0
          %v486 = vpop.f32.mrb[0].mxu0
          %487 = vdwg.mxu0
          %v488 = vpack.c.bf16 %v483, %v483
          %489 = vst.msk [vmem:[#allocation4] sm:$0xf] %vm430, %v488
        $region60: #{tpu_custom_call.1} parent=51 // pred_fallthru
          _
        %s490 = smul.u32 %s28, 8
        %s491 = sshra.s32 %s490, 3
        %s492 = sand.u32 %s490, 7
        %s493 = smul.addr %s491, 4
        %s494 = scalar_lea.vmem [#allocation2], %s493
        %v495 = vld [vmem:[%s494] sm:$0xf]
        %v496 = vld [vmem:[%s3] sm:$0xf]
        %v497 = vld [vmem:[%s3 + $0x4] sm:$0xf]
        %v498 = vld [vmem:[%s3 + $0x8] sm:$0xf]
        %v499 = vld [vmem:[%s3 + $0xc] sm:$0xf]
        %v504 = vunpack.c.l.b16 %v496
        %v505 = vunpack.c.l.b16 %v497
        %v506 = vunpack.c.l.b16 %v498
        %v507 = vunpack.c.l.b16 %v499
        %v508 = vpack.c.b16 %v505, %v504
        %v509 = vpack.c.b16 %v507, %v506
        %vm512 = vcmask 261120
        %v514 = vsel %vm512, %v495, 0
        %516 = vmatprep.subr.bf16.mxu0 0
        %517 = vmatpush1.bf16.msra.mxu0 %v508
        %518 = vmatprep.subr.bf16.mxu0 0
        %519 = vmatpush1.bf16.msra.mxu0 %v509
        %520 = vmatprep.subr.bf16.mxu0 0
        %521 = vmatpush1.bf16.msra.mxu0 0
        %522 = vmatprep.subr.bf16.mxu0 0
        %523 = vmatpush1.bf16.msra.mxu0 0
        %524 = vmatprep.subr.bf16.mxu0 0
        %525 = vmatpush1.bf16.msra.mxu0 0
        %526 = vmatprep.subr.bf16.mxu0 0
        %527 = vmatpush1.bf16.msra.mxu0 0
        %528 = vmatprep.subr.bf16.mxu0 0
        %529 = vmatpush1.bf16.msra.mxu0 0
        %530 = vmatprep.subr.bf16.mxu0 0
        %531 = vmatpush1.bf16.msra.mxu0 0
        %532 = vmatprep.subr.bf16.mxu0 0
        %533 = vmatpush1.bf16.msra.mxu0 0
        %534 = vmatprep.subr.bf16.mxu0 0
        %535 = vmatpush1.bf16.msra.mxu0 0
        %536 = vmatprep.subr.bf16.mxu0 0
        %537 = vmatpush1.bf16.msra.mxu0 0
        %538 = vmatprep.subr.bf16.mxu0 0
        %539 = vmatpush1.bf16.msra.mxu0 0
        %540 = vmatprep.subr.bf16.mxu0 0
        %541 = vmatpush1.bf16.msra.mxu0 0
        %542 = vmatprep.subr.bf16.mxu0 0
        %543 = vmatpush1.bf16.msra.mxu0 0
        %544 = vmatprep.subr.bf16.mxu0 0
        %545 = vmatpush1.bf16.msra.mxu0 0
        %546 = vmatprep.subr.bf16.mxu0 0
        %547 = vmatpush1.bf16.msra.mxu0 0
        %548 = vmatprep.mubr.bf16.mxu0 0
        %549 = vmatmul.mubr.bf16.gmra.mrb[0].mxu0 %v514
        %v550 = vpop.f32.mrb[0].mxu0
        %v551 = vadd.f32 0.0, %v550
        %v552 = vpop.f32.mrb[0].mxu0
        %v553 = vpop.f32.mrb[0].mxu0
        %v554 = vpop.f32.mrb[0].mxu0
        %555 = vdwg.mxu0
        %v556 = vpack.c.bf16 %v551, %v551
        %vm557 = vcmask 519168
        %558 = vst.msk [vmem:[#allocation5] sm:$0xf] %vm557, %v556
        %v559 = vld [vmem:[#allocation5] sm:$0xf]
        %v560 = vld [vmem:[#allocation3] sm:$0xf]
        %v561 = vld [vmem:[#allocation4] sm:$0xf]
        %vm562 = vcmask 130048
        %v564 = vsel %vm562, %v559, 0
        %v567 = vsel %vm562, %v560, 0
        %569 = vmatprep.subr.bf16.mxu0 0
        %570 = vmatpush1.bf16.xpose.msra.mxu0 %v567
        %571 = vmatprep.subr.bf16.mxu0 0
        %572 = vmatpush1.bf16.xpose.msra.mxu0 0
        %573 = vmatprep.subr.bf16.mxu0 0
        %574 = vmatpush1.bf16.xpose.msra.mxu0 0
        %575 = vmatprep.subr.bf16.mxu0 0
        %576 = vmatpush1.bf16.xpose.msra.mxu0 0
        %577 = vmatprep.subr.bf16.mxu0 0
        %578 = vmatpush1.bf16.xpose.msra.mxu0 0
        %579 = vmatprep.subr.bf16.mxu0 0
        %580 = vmatpush1.bf16.xpose.msra.mxu0 0
        %581 = vmatprep.subr.bf16.mxu0 0
        %582 = vmatpush1.bf16.xpose.msra.mxu0 0
        %583 = vmatprep.subr.bf16.mxu0 0
        %584 = vmatpush1.bf16.xpose.msra.mxu0 0
        %585 = vmatprep.subr.bf16.mxu0 0
        %586 = vmatpush1.bf16.xpose.msra.mxu0 0
        %587 = vmatprep.subr.bf16.mxu0 0
        %588 = vmatpush1.bf16.xpose.msra.mxu0 0
        %589 = vmatprep.subr.bf16.mxu0 0
        %590 = vmatpush1.bf16.xpose.msra.mxu0 0
        %591 = vmatprep.subr.bf16.mxu0 0
        %592 = vmatpush1.bf16.xpose.msra.mxu0 0
        %593 = vmatprep.subr.bf16.mxu0 0
        %594 = vmatpush1.bf16.xpose.msra.mxu0 0
        %595 = vmatprep.subr.bf16.mxu0 0
        %596 = vmatpush1.bf16.xpose.msra.mxu0 0
        %597 = vmatprep.subr.bf16.mxu0 0
        %598 = vmatpush1.bf16.xpose.msra.mxu0 0
        %599 = vmatprep.subr.bf16.mxu0 0
        %600 = vmatpush1.bf16.xpose.msra.mxu0 0
        %601 = vmatprep.mubr.bf16.mxu0 0
        %602 = vmatmul.mubr.bf16.gmra.mrb[0].mxu0 %v564
        %v603 = vpop.f32.mrb[0].mxu0
        %v604 = vadd.f32 0.0, %v603
        %v605 = vpop.f32.mrb[0].mxu0
        %v606 = vpop.f32.mrb[0].mxu0
        %v607 = vpop.f32.mrb[0].mxu0
        %608 = vdwg.mxu0
        %vm609 = vcmask 64512
        %v610 = vsel %vm609, %v604, -inf
        %611 = vmax.xlane.f32.xlu0 %v610
        %v612 = vpop.xlane.xlu0 %611
        %v613 = vsub.f32 %v604, %v612
        %v614 = vmul.f32 %v613, 1.442695
        %v615 = vpow.pop %v614
        %v616 = vsel %vm609, %v615, 0.0
        %617 = vadd.xlane.f32.xlu0 %v616
        %v618 = vpop.xlane.xlu0 %617
        %v619 = vpack.c.bf16 %v615, %v615
        %v621 = vsel %vm609, %v619, 0
        %vm623 = vcmask 1043456
        %v625 = vsel %vm623, %v561, 0
        %627 = vmatprep.subr.bf16.mxu0 0
        %628 = vmatpush1.bf16.msra.mxu0 %v625
        %629 = vmatprep.subr.bf16.mxu0 0
        %630 = vmatpush1.bf16.msra.mxu0 0
        %631 = vmatprep.subr.bf16.mxu0 0
        %632 = vmatpush1.bf16.msra.mxu0 0
        %633 = vmatprep.subr.bf16.mxu0 0
        %634 = vmatpush1.bf16.msra.mxu0 0
        %635 = vmatprep.subr.bf16.mxu0 0
        %636 = vmatpush1.bf16.msra.mxu0 0
        %637 = vmatprep.subr.bf16.mxu0 0
        %638 = vmatpush1.bf16.msra.mxu0 0
        %639 = vmatprep.subr.bf16.mxu0 0
        %640 = vmatpush1.bf16.msra.mxu0 0
        %641 = vmatprep.subr.bf16.mxu0 0
        %642 = vmatpush1.bf16.msra.mxu0 0
        %643 = vmatprep.subr.bf16.mxu0 0
        %644 = vmatpush1.bf16.msra.mxu0 0
        %645 = vmatprep.subr.bf16.mxu0 0
        %646 = vmatpush1.bf16.msra.mxu0 0
        %647 = vmatprep.subr.bf16.mxu0 0
        %648 = vmatpush1.bf16.msra.mxu0 0
        %649 = vmatprep.subr.bf16.mxu0 0
        %650 = vmatpush1.bf16.msra.mxu0 0
        %651 = vmatprep.subr.bf16.mxu0 0
        %652 = vmatpush1.bf16.msra.mxu0 0
        %653 = vmatprep.subr.bf16.mxu0 0
        %654 = vmatpush1.bf16.msra.mxu0 0
        %655 = vmatprep.subr.bf16.mxu0 0
        %656 = vmatpush1.bf16.msra.mxu0 0
        %657 = vmatprep.subr.bf16.mxu0 0
        %658 = vmatpush1.bf16.msra.mxu0 0
        %659 = vmatprep.mubr.bf16.mxu0 0
        %660 = vmatmul.mubr.bf16.gmra.mrb[0].mxu0 %v621
        %v661 = vpop.f32.mrb[0].mxu0
        %v662 = vadd.f32 0.0, %v661
        %v663 = vpop.f32.mrb[0].mxu0
        %v664 = vpop.f32.mrb[0].mxu0
        %v665 = vpop.f32.mrb[0].mxu0
        %666 = vdwg.mxu0
        %v667 = vrcp.pop %v618
        %v668 = vmul.f32 %v662, %v667
        %v669 = vpack.c.bf16 %v668, %v668
        %v671 = vunpack.c.l.b16 %v559
        %v672 = vpack.c.b16 %v671, %v671
        %673 = vrot.lane.b32.xlu0 %v672, 112
        %v674 = vpop.permute.xlu0 %673
        %v676 = vunpack.c.l.b16 %v560
        %v677 = vpack.c.b16 %v676, %v676
        %678 = vrot.lane.b32.xlu0 %v677, 112
        %v679 = vpop.permute.xlu0 %678
        %v681 = vsel %vm562, %v674, 0
        %v684 = vsel %vm562, %v679, 0
        %686 = vmatprep.subr.bf16.mxu0 0
        %687 = vmatpush1.bf16.xpose.msra.mxu0 %v684
        %688 = vmatprep.subr.bf16.mxu0 0
        %689 = vmatpush1.bf16.xpose.msra.mxu0 0
        %690 = vmatprep.subr.bf16.mxu0 0
        %691 = vmatpush1.bf16.xpose.msra.mxu0 0
        %692 = vmatprep.subr.bf16.mxu0 0
        %693 = vmatpush1.bf16.xpose.msra.mxu0 0
        %694 = vmatprep.subr.bf16.mxu0 0
        %695 = vmatpush1.bf16.xpose.msra.mxu0 0
        %696 = vmatprep.subr.bf16.mxu0 0
        %697 = vmatpush1.bf16.xpose.msra.mxu0 0
        %698 = vmatprep.subr.bf16.mxu0 0
        %699 = vmatpush1.bf16.xpose.msra.mxu0 0
        %700 = vmatprep.subr.bf16.mxu0 0
        %701 = vmatpush1.bf16.xpose.msra.mxu0 0
        %702 = vmatprep.subr.bf16.mxu0 0
        %703 = vmatpush1.bf16.xpose.msra.mxu0 0
        %704 = vmatprep.subr.bf16.mxu0 0
        %705 = vmatpush1.bf16.xpose.msra.mxu0 0
        %706 = vmatprep.subr.bf16.mxu0 0
        %707 = vmatpush1.bf16.xpose.msra.mxu0 0
        %708 = vmatprep.subr.bf16.mxu0 0
        %709 = vmatpush1.bf16.xpose.msra.mxu0 0
        %710 = vmatprep.subr.bf16.mxu0 0
        %711 = vmatpush1.bf16.xpose.msra.mxu0 0
        %712 = vmatprep.subr.bf16.mxu0 0
        %713 = vmatpush1.bf16.xpose.msra.mxu0 0
        %714 = vmatprep.subr.bf16.mxu0 0
        %715 = vmatpush1.bf16.xpose.msra.mxu0 0
        %716 = vmatprep.subr.bf16.mxu0 0
        %717 = vmatpush1.bf16.xpose.msra.mxu0 0
        %718 = vmatprep.mubr.bf16.mxu0 0
        %719 = vmatmul.mubr.bf16.gmra.mrb[0].mxu0 %v681
        %v720 = vpop.f32.mrb[0].mxu0
        %v721 = vadd.f32 0.0, %v720
        %v722 = vpop.f32.mrb[0].mxu0
        %v723 = vpop.f32.mrb[0].mxu0
        %v724 = vpop.f32.mrb[0].mxu0
        %725 = vdwg.mxu0
        %v726 = vsel %vm609, %v721, -inf
        %727 = vmax.xlane.f32.xlu0 %v726
        %v728 = vpop.xlane.xlu0 %727
        %v729 = vsub.f32 %v721, %v728
        %v730 = vmul.f32 %v729, 1.442695
        %v731 = vpow.pop %v730
        %v732 = vsel %vm609, %v731, 0.0
        %733 = vadd.xlane.f32.xlu0 %v732
        %v734 = vpop.xlane.xlu0 %733
        %v735 = vpack.c.bf16 %v731, %v731
        %v737 = vunpack.c.l.b16 %v561
        %v738 = vpack.c.b16 %v737, %v737
        %739 = vrot.lane.b32.xlu0 %v738, 112
        %v740 = vpop.permute.xlu0 %739
        %v742 = vsel %vm609, %v735, 0
        %v745 = vsel %vm623, %v740, 0
        %747 = vmatprep.subr.bf16.mxu0 0
        %748 = vmatpush1.bf16.msra.mxu0 %v745
        %749 = vmatprep.subr.bf16.mxu0 0
        %750 = vmatpush1.bf16.msra.mxu0 0
        %751 = vmatprep.subr.bf16.mxu0 0
        %752 = vmatpush1.bf16.msra.mxu0 0
        %753 = vmatprep.subr.bf16.mxu0 0
        %754 = vmatpush1.bf16.msra.mxu0 0
        %755 = vmatprep.subr.bf16.mxu0 0
        %756 = vmatpush1.bf16.msra.mxu0 0
        %757 = vmatprep.subr.bf16.mxu0 0
        %758 = vmatpush1.bf16.msra.mxu0 0
        %759 = vmatprep.subr.bf16.mxu0 0
        %760 = vmatpush1.bf16.msra.mxu0 0
        %761 = vmatprep.subr.bf16.mxu0 0
        %762 = vmatpush1.bf16.msra.mxu0 0
        %763 = vmatprep.subr.bf16.mxu0 0
        %764 = vmatpush1.bf16.msra.mxu0 0
        %765 = vmatprep.subr.bf16.mxu0 0
        %766 = vmatpush1.bf16.msra.mxu0 0
        %767 = vmatprep.subr.bf16.mxu0 0
        %768 = vmatpush1.bf16.msra.mxu0 0
        %769 = vmatprep.subr.bf16.mxu0 0
        %770 = vmatpush1.bf16.msra.mxu0 0
        %771 = vmatprep.subr.bf16.mxu0 0
        %772 = vmatpush1.bf16.msra.mxu0 0
        %773 = vmatprep.subr.bf16.mxu0 0
        %774 = vmatpush1.bf16.msra.mxu0 0
        %775 = vmatprep.subr.bf16.mxu0 0
        %776 = vmatpush1.bf16.msra.mxu0 0
        %777 = vmatprep.subr.bf16.mxu0 0
        %778 = vmatpush1.bf16.msra.mxu0 0
        %779 = vmatprep.mubr.bf16.mxu0 0
        %780 = vmatmul.mubr.bf16.gmra.mrb[0].mxu0 %v742
        %v781 = vpop.f32.mrb[0].mxu0
        %v782 = vadd.f32 0.0, %v781
        %v783 = vpop.f32.mrb[0].mxu0
        %v784 = vpop.f32.mrb[0].mxu0
        %v785 = vpop.f32.mrb[0].mxu0
        %786 = vdwg.mxu0
        %v787 = vrcp.pop %v734
        %v788 = vmul.f32 %v782, %v787
        %v789 = vpack.c.bf16 %v788, %v788
        %790 = vrot.lane.b32.xlu0 %v672, 96
        %v791 = vpop.permute.xlu0 %790
        %792 = vrot.lane.b32.xlu0 %v677, 96
        %v793 = vpop.permute.xlu0 %792
        %v795 = vsel %vm562, %v791, 0
        %v798 = vsel %vm562, %v793, 0
        %800 = vmatprep.subr.bf16.mxu0 0
        %801 = vmatpush1.bf16.xpose.msra.mxu0 %v798
        %802 = vmatprep.subr.bf16.mxu0 0
        %803 = vmatpush1.bf16.xpose.msra.mxu0 0
        %804 = vmatprep.subr.bf16.mxu0 0
        %805 = vmatpush1.bf16.xpose.msra.mxu0 0
        %806 = vmatprep.subr.bf16.mxu0 0
        %807 = vmatpush1.bf16.xpose.msra.mxu0 0
        %808 = vmatprep.subr.bf16.mxu0 0
        %809 = vmatpush1.bf16.xpose.msra.mxu0 0
        %810 = vmatprep.subr.bf16.mxu0 0
        %811 = vmatpush1.bf16.xpose.msra.mxu0 0
        %812 = vmatprep.subr.bf16.mxu0 0
        %813 = vmatpush1.bf16.xpose.msra.mxu0 0
        %814 = vmatprep.subr.bf16.mxu0 0
        %815 = vmatpush1.bf16.xpose.msra.mxu0 0
        %816 = vmatprep.subr.bf16.mxu0 0
        %817 = vmatpush1.bf16.xpose.msra.mxu0 0
        %818 = vmatprep.subr.bf16.mxu0 0
        %819 = vmatpush1.bf16.xpose.msra.mxu0 0
        %820 = vmatprep.subr.bf16.mxu0 0
        %821 = vmatpush1.bf16.xpose.msra.mxu0 0
        %822 = vmatprep.subr.bf16.mxu0 0
        %823 = vmatpush1.bf16.xpose.msra.mxu0 0
        %824 = vmatprep.subr.bf16.mxu0 0
        %825 = vmatpush1.bf16.xpose.msra.mxu0 0
        %826 = vmatprep.subr.bf16.mxu0 0
        %827 = vmatpush1.bf16.xpose.msra.mxu0 0
        %828 = vmatprep.subr.bf16.mxu0 0
        %829 = vmatpush1.bf16.xpose.msra.mxu0 0
        %830 = vmatprep.subr.bf16.mxu0 0
        %831 = vmatpush1.bf16.xpose.msra.mxu0 0
        %832 = vmatprep.mubr.bf16.mxu0 0
        %833 = vmatmul.mubr.bf16.gmra.mrb[0].mxu0 %v795
        %v834 = vpop.f32.mrb[0].mxu0
        %v835 = vadd.f32 0.0, %v834
        %v836 = vpop.f32.mrb[0].mxu0
        %v837 = vpop.f32.mrb[0].mxu0
        %v838 = vpop.f32.mrb[0].mxu0
        %839 = vdwg.mxu0
        %v840 = vsel %vm609, %v835, -inf
        %841 = vmax.xlane.f32.xlu0 %v840
        %v842 = vpop.xlane.xlu0 %841
        %v843 = vsub.f32 %v835, %v842
        %v844 = vmul.f32 %v843, 1.442695
        %v845 = vpow.pop %v844
        %v846 = vsel %vm609, %v845, 0.0
        %847 = vadd.xlane.f32.xlu0 %v846
        %v848 = vpop.xlane.xlu0 %847
        %v849 = vpack.c.bf16 %v845, %v845
        %850 = vrot.lane.b32.xlu0 %v738, 96
        %v851 = vpop.permute.xlu0 %850
        %v853 = vsel %vm609, %v849, 0
        %v856 = vsel %vm623, %v851, 0
        %858 = vmatprep.subr.bf16.mxu0 0
        %859 = vmatpush1.bf16.msra.mxu0 %v856
        %860 = vmatprep.subr.bf16.mxu0 0
        %861 = vmatpush1.bf16.msra.mxu0 0
        %862 = vmatprep.subr.bf16.mxu0 0
        %863 = vmatpush1.bf16.msra.mxu0 0
        %864 = vmatprep.subr.bf16.mxu0 0
        %865 = vmatpush1.bf16.msra.mxu0 0
        %866 = vmatprep.subr.bf16.mxu0 0
        %867 = vmatpush1.bf16.msra.mxu0 0
        %868 = vmatprep.subr.bf16.mxu0 0
        %869 = vmatpush1.bf16.msra.mxu0 0
        %870 = vmatprep.subr.bf16.mxu0 0
        %871 = vmatpush1.bf16.msra.mxu0 0
        %872 = vmatprep.subr.bf16.mxu0 0
        %873 = vmatpush1.bf16.msra.mxu0 0
        %874 = vmatprep.subr.bf16.mxu0 0
        %875 = vmatpush1.bf16.msra.mxu0 0
        %876 = vmatprep.subr.bf16.mxu0 0
        %877 = vmatpush1.bf16.msra.mxu0 0
        %878 = vmatprep.subr.bf16.mxu0 0
        %879 = vmatpush1.bf16.msra.mxu0 0
        %880 = vmatprep.subr.bf16.mxu0 0
        %881 = vmatpush1.bf16.msra.mxu0 0
        %882 = vmatprep.subr.bf16.mxu0 0
        %883 = vmatpush1.bf16.msra.mxu0 0
        %884 = vmatprep.subr.bf16.mxu0 0
        %885 = vmatpush1.bf16.msra.mxu0 0
        %886 = vmatprep.subr.bf16.mxu0 0
        %887 = vmatpush1.bf16.msra.mxu0 0
        %888 = vmatprep.subr.bf16.mxu0 0
        %889 = vmatpush1.bf16.msra.mxu0 0
        %890 = vmatprep.mubr.bf16.mxu0 0
        %891 = vmatmul.mubr.bf16.gmra.mrb[0].mxu0 %v853
        %v892 = vpop.f32.mrb[0].mxu0
        %v893 = vadd.f32 0.0, %v892
        %v894 = vpop.f32.mrb[0].mxu0
        %v895 = vpop.f32.mrb[0].mxu0
        %v896 = vpop.f32.mrb[0].mxu0
        %897 = vdwg.mxu0
        %v898 = vrcp.pop %v848
        %v899 = vmul.f32 %v893, %v898
        %v900 = vpack.c.bf16 %v899, %v899
        %901 = vrot.lane.b32.xlu0 %v672, 80
        %v902 = vpop.permute.xlu0 %901
        %903 = vrot.lane.b32.xlu0 %v677, 80
        %v904 = vpop.permute.xlu0 %903
        %v906 = vsel %vm562, %v902, 0
        %v909 = vsel %vm562, %v904, 0
        %911 = vmatprep.subr.bf16.mxu0 0
        %912 = vmatpush1.bf16.xpose.msra.mxu0 %v909
        %913 = vmatprep.subr.bf16.mxu0 0
        %914 = vmatpush1.bf16.xpose.msra.mxu0 0
        %915 = vmatprep.subr.bf16.mxu0 0
        %916 = vmatpush1.bf16.xpose.msra.mxu0 0
        %917 = vmatprep.subr.bf16.mxu0 0
        %918 = vmatpush1.bf16.xpose.msra.mxu0 0
        %919 = vmatprep.subr.bf16.mxu0 0
        %920 = vmatpush1.bf16.xpose.msra.mxu0 0
        %921 = vmatprep.subr.bf16.mxu0 0
        %922 = vmatpush1.bf16.xpose.msra.mxu0 0
        %923 = vmatprep.subr.bf16.mxu0 0
        %924 = vmatpush1.bf16.xpose.msra.mxu0 0
        %925 = vmatprep.subr.bf16.mxu0 0
        %926 = vmatpush1.bf16.xpose.msra.mxu0 0
        %927 = vmatprep.subr.bf16.mxu0 0
        %928 = vmatpush1.bf16.xpose.msra.mxu0 0
        %929 = vmatprep.subr.bf16.mxu0 0
        %930 = vmatpush1.bf16.xpose.msra.mxu0 0
        %931 = vmatprep.subr.bf16.mxu0 0
        %932 = vmatpush1.bf16.xpose.msra.mxu0 0
        %933 = vmatprep.subr.bf16.mxu0 0
        %934 = vmatpush1.bf16.xpose.msra.mxu0 0
        %935 = vmatprep.subr.bf16.mxu0 0
        %936 = vmatpush1.bf16.xpose.msra.mxu0 0
        %937 = vmatprep.subr.bf16.mxu0 0
        %938 = vmatpush1.bf16.xpose.msra.mxu0 0
        %939 = vmatprep.subr.bf16.mxu0 0
        %940 = vmatpush1.bf16.xpose.msra.mxu0 0
        %941 = vmatprep.subr.bf16.mxu0 0
        %942 = vmatpush1.bf16.xpose.msra.mxu0 0
        %943 = vmatprep.mubr.bf16.mxu0 0
        %944 = vmatmul.mubr.bf16.gmra.mrb[0].mxu0 %v906
        %v945 = vpop.f32.mrb[0].mxu0
        %v946 = vadd.f32 0.0, %v945
        %v947 = vpop.f32.mrb[0].mxu0
        %v948 = vpop.f32.mrb[0].mxu0
        %v949 = vpop.f32.mrb[0].mxu0
        %950 = vdwg.mxu0
        %v951 = vsel %vm609, %v946, -inf
        %952 = vmax.xlane.f32.xlu0 %v951
        %v953 = vpop.xlane.xlu0 %952
        %v954 = vsub.f32 %v946, %v953
        %v955 = vmul.f32 %v954, 1.442695
        %v956 = vpow.pop %v955
        %v957 = vsel %vm609, %v956, 0.0
        %958 = vadd.xlane.f32.xlu0 %v957
        %v959 = vpop.xlane.xlu0 %958
        %v960 = vpack.c.bf16 %v956, %v956
        %961 = vrot.lane.b32.xlu0 %v738, 80
        %v962 = vpop.permute.xlu0 %961
        %v964 = vsel %vm609, %v960, 0
        %v967 = vsel %vm623, %v962, 0
        %969 = vmatprep.subr.bf16.mxu0 0
        %970 = vmatpush1.bf16.msra.mxu0 %v967
        %971 = vmatprep.subr.bf16.mxu0 0
        %972 = vmatpush1.bf16.msra.mxu0 0
        %973 = vmatprep.subr.bf16.mxu0 0
        %974 = vmatpush1.bf16.msra.mxu0 0
        %975 = vmatprep.subr.bf16.mxu0 0
        %976 = vmatpush1.bf16.msra.mxu0 0
        %977 = vmatprep.subr.bf16.mxu0 0
        %978 = vmatpush1.bf16.msra.mxu0 0
        %979 = vmatprep.subr.bf16.mxu0 0
        %980 = vmatpush1.bf16.msra.mxu0 0
        %981 = vmatprep.subr.bf16.mxu0 0
        %982 = vmatpush1.bf16.msra.mxu0 0
        %983 = vmatprep.subr.bf16.mxu0 0
        %984 = vmatpush1.bf16.msra.mxu0 0
        %985 = vmatprep.subr.bf16.mxu0 0
        %986 = vmatpush1.bf16.msra.mxu0 0
        %987 = vmatprep.subr.bf16.mxu0 0
        %988 = vmatpush1.bf16.msra.mxu0 0
        %989 = vmatprep.subr.bf16.mxu0 0
        %990 = vmatpush1.bf16.msra.mxu0 0
        %991 = vmatprep.subr.bf16.mxu0 0
        %992 = vmatpush1.bf16.msra.mxu0 0
        %993 = vmatprep.subr.bf16.mxu0 0
        %994 = vmatpush1.bf16.msra.mxu0 0
        %995 = vmatprep.subr.bf16.mxu0 0
        %996 = vmatpush1.bf16.msra.mxu0 0
        %997 = vmatprep.subr.bf16.mxu0 0
        %998 = vmatpush1.bf16.msra.mxu0 0
        %999 = vmatprep.subr.bf16.mxu0 0
        %1000 = vmatpush1.bf16.msra.mxu0 0
        %1001 = vmatprep.mubr.bf16.mxu0 0
        %1002 = vmatmul.mubr.bf16.gmra.mrb[0].mxu0 %v964
        %v1003 = vpop.f32.mrb[0].mxu0
        %v1004 = vadd.f32 0.0, %v1003
        %v1005 = vpop.f32.mrb[0].mxu0
        %v1006 = vpop.f32.mrb[0].mxu0
        %v1007 = vpop.f32.mrb[0].mxu0
        %1008 = vdwg.mxu0
        %v1009 = vrcp.pop %v959
        %v1010 = vmul.f32 %v1004, %v1009
        %v1011 = vpack.c.bf16 %v1010, %v1010
        %1013 = vrot.lane.b32.xlu0 %v789, 16
        %v1014 = vpop.permute.xlu0 %1013
        %1016 = vrot.lane.b32.xlu0 %v900, 32
        %v1017 = vpop.permute.xlu0 %1016
        %1019 = vrot.lane.b32.xlu0 %v1011, 48
        %v1020 = vpop.permute.xlu0 %1019
        %v1023 = vsel %vm562, %v669, %v1014
        %v1025 = vsel %vm512, %v1023, %v1017
        %vm1026 = vcmask 392192
        %v1028 = vsel %vm1026, %v1025, %v1020
        %1030 = vst.msk [vmem:[#allocation6] sm:$0xf] %vm557, %v1028
        %v1031 = vld [vmem:[#allocation6] sm:$0xf]
        %v1032 = vld [vmem:[%s6] sm:$0xf]
        %v1033 = vld [vmem:[%s6 + $0x4] sm:$0xf]
        %v1034 = vld [vmem:[%s6 + $0x8] sm:$0xf]
        %v1035 = vld [vmem:[%s6 + $0xc] sm:$0xf]
        %v1036 = vld [vmem:[%s6 + $0x10] sm:$0xf]
        %v1037 = vld [vmem:[%s6 + $0x14] sm:$0xf]
        %v1038 = vld [vmem:[%s6 + $0x18] sm:$0xf]
        %v1039 = vld [vmem:[%s6 + $0x1c] sm:$0xf]
        %v1040 = vld [vmem:[%s7] sm:$0x1]
        %v1042 = vlaneseq
        %v1043 = vshrl.u32 %v1042, 7
        %v1044 = vsub.s32 0, %v1043
        %v1045 = vrot.slane %v1040, %v1044
        %v1055 = vunpack.c.l.b16 %v1032
        %v1056 = vunpack.c.l.b16 %v1033
        %v1057 = vunpack.c.l.b16 %v1034
        %v1058 = vunpack.c.l.b16 %v1035
        %v1059 = vunpack.c.l.b16 %v1036
        %v1060 = vunpack.c.l.b16 %v1037
        %v1061 = vunpack.c.l.b16 %v1038
        %v1062 = vunpack.c.l.b16 %v1039
        %v1063 = vpack.c.b16 %v1056, %v1055
        %v1064 = vpack.c.b16 %v1058, %v1057
        %v1065 = vpack.c.b16 %v1060, %v1059
        %v1066 = vpack.c.b16 %v1062, %v1061
        %vm1071 = vcmask 523264
        %v1073 = vsel %vm1071, %v1031, 0
        %1075 = vmatprep.subr.bf16.mxu0 0
        %1076 = vmatpush1.bf16.msra.mxu0 %v1063
        %1077 = vmatprep.subr.bf16.mxu0 0
        %1078 = vmatpush1.bf16.msra.mxu0 %v1064
        %1079 = vmatprep.subr.bf16.mxu0 0
        %1080 = vmatpush1.bf16.msra.mxu0 %v1065
        %1081 = vmatprep.subr.bf16.mxu0 0
        %1082 = vmatpush1.bf16.msra.mxu0 %v1066
        %1083 = vmatprep.subr.bf16.mxu0 0
        %1084 = vmatpush1.bf16.msra.mxu0 0
        %1085 = vmatprep.subr.bf16.mxu0 0
        %1086 = vmatpush1.bf16.msra.mxu0 0
        %1087 = vmatprep.subr.bf16.mxu0 0
        %1088 = vmatpush1.bf16.msra.mxu0 0
        %1089 = vmatprep.subr.bf16.mxu0 0
        %1090 = vmatpush1.bf16.msra.mxu0 0
        %1091 = vmatprep.subr.bf16.mxu0 0
        %1092 = vmatpush1.bf16.msra.mxu0 0
        %1093 = vmatprep.subr.bf16.mxu0 0
        %1094 = vmatpush1.bf16.msra.mxu0 0
        %1095 = vmatprep.subr.bf16.mxu0 0
        %1096 = vmatpush1.bf16.msra.mxu0 0
        %1097 = vmatprep.subr.bf16.mxu0 0
        %1098 = vmatpush1.bf16.msra.mxu0 0
        %1099 = vmatprep.subr.bf16.mxu0 0
        %1100 = vmatpush1.bf16.msra.mxu0 0
        %1101 = vmatprep.subr.bf16.mxu0 0
        %1102 = vmatpush1.bf16.msra.mxu0 0
        %1103 = vmatprep.subr.bf16.mxu0 0
        %1104 = vmatpush1.bf16.msra.mxu0 0
        %1105 = vmatprep.subr.bf16.mxu0 0
        %1106 = vmatpush1.bf16.msra.mxu0 0
        %1107 = vmatprep.mubr.bf16.mxu0 0
        %1108 = vmatmul.mubr.bf16.gmra.mrb[0].mxu0 %v1073
        %v1109 = vpop.f32.mrb[0].mxu0
        %v1110 = vadd.f32 %v1045, %v1109
        %v1111 = vpop.f32.mrb[0].mxu0
        %v1112 = vpop.f32.mrb[0].mxu0
        %v1113 = vpop.f32.mrb[0].mxu0
        %1114 = vdwg.mxu0
        %1115 = vst.msk [vmem:[%s325] sm:$0xff] %vm512, %v1110
        %s1116 = sand.u32 %s218, 1
        %s1117 = scalar_lea.sflag [#allocation9], %s1116
        %s1118 = sand.u32 %s218, 1
        %s1119 = smul.addr %s1118, 8
        %s1120 = scalar_lea.vmem [#allocation10], %s1119
        // Predicated region
        $region61: #{tpu_custom_call.1} parent=51 // pred_check
          %p1121 = pneg %p228
        $region62: #{tpu_custom_call.1} parent=51 // pred_check_branch
          %1123 = sbr.rel (%p1121) target = $region64
        $region63: #{tpu_custom_call.1} parent=51 // pred_region
          %s1125 = ssub.s32 128, 128
          %1126 = vsyncadd %s1117, %s1125
          %s1127 = sadd.s32 %s28, %s27
          %s1128 = smul.addr %s1127, 128
          %s1129 = scalar_lea.hbm %s8, %s1128
          %s1131 = sshll.u32 %s1120, 4
          %s1132 = int_to_ptr.vmem [resolvable:$true] %s1131
          %1134 = dma.vmem_to_hbm [thread:$0]  %s1132, 128, %s1129, %s1117
        $region64: #{tpu_custom_call.1} parent=51 // pred_fallthru
          _
      $region52: #{tpu_custom_call.1} parent=5 // pred_fallthru
        _
      %p1135 = scmp.le.s32.totalorder 2, %s18
      // Predicated region
      $region65: #{tpu_custom_call.1} parent=5 // pred_check
        %p1136 = pneg %p1135
      $region66: #{tpu_custom_call.1} parent=5 // pred_check_branch
        %1138 = sbr.rel (%p1136) target = $region68
      $region67: #{tpu_custom_call.1} parent=5 // pred_region
        %s1139 = ssub.s32 %s18, 2
        // Predicated region
        $region69: #{tpu_custom_call.1} parent=67 // pred_check
          %p1140 = pneg %p234
        $region70: #{tpu_custom_call.1} parent=67 // pred_check_branch
          %1142 = sbr.rel (%p1140) target = $region72
        $region71: #{tpu_custom_call.1} parent=67 // pred_region
          %s1143 = sand.u32 %s219, 1
          %s1144 = scalar_lea.sflag [#allocation9], %s1143
          %s1145 = sand.u32 %s219, 1
          %s1146 = smul.addr %s1145, 8
          %s1147 = scalar_lea.vmem [#allocation10], %s1146
          %1148 = dma.done %s1144, 128
        $region72: #{tpu_custom_call.1} parent=67 // pred_fallthru
          _
      $region68: #{tpu_custom_call.1} parent=5 // pred_fallthru
        _
    $region6: #{tpu_custom_call.1} parent=1 // loop_footer
      %s22 = sadd.s32 1, %s18
    $region7: #{tpu_custom_call.1} parent=1 // loop_footer_branch
      %17 = sbr.rel target = $region3
    $region8: #{tpu_custom_call.1} parent=1 // loop_exit
      _
    %1149 = vsyncpa [#allocation8], 1
    %s1150 = scalar_lea.sflag [#allocation8], 1
    %1151 = vsyncpa %s1150, 1
    %1152 = vsyncpa [#allocation9], 1
    %s1153 = scalar_lea.sflag [#allocation9], 1
    %1154 = vsyncpa %s1153, 1

</llo_original>
